<compile_context>
chip_gen: v7x
topology: tpu7x:2x2x1
jax: 0.10.0
libtpu: 0.0.40
codegen_flags: <defaults>
</compile_context>

<pallas_src>
import jax
import jax.numpy as jnp
from jax import lax
from jax.experimental import pallas as pl
from jax.experimental.pallas import tpu as pltpu


def _make_fused_kernel(Cn, C, HW, HW_pad, tq):
    """Build the fused siamese-attention kernel body (all dims static)."""
    n_chunks = HW_pad // tq
    need_mask = HW_pad != HW
    n_main = n_chunks - 1 if need_mask else n_chunks
    dn_t = (((0,), (0,)), ((), ()))  # contract the channel (sublane) axis of both

    def kernel(f_ref, s_ref, wa_ref, wb_ref, w5_ref, o_ref, fa_ref, sb_ref):
        # --- 1x1 convs for this (batch, head), hoisted over the full spatial width ---
        fa = jnp.dot(wa_ref[...], f_ref[0, 0], preferred_element_type=jnp.float32)
        fa_ref[0] = fa[:Cn].astype(jnp.bfloat16)      # key     (Cn, HW_pad)
        fa_ref[1] = fa[Cn:].astype(jnp.bfloat16)      # value1  (Cn, HW_pad)
        sb = jnp.dot(wb_ref[...], s_ref[0, 0], preferred_element_type=jnp.float32)
        sb_ref[0] = sb[:Cn].astype(jnp.bfloat16)      # query   (Cn, HW_pad)
        sb_ref[1] = sb[Cn:].astype(jnp.bfloat16)      # value2  (Cn, HW_pad)

        def chunk_update(ci, carry, bias):
            m, den, num = carry
            off = ci * tq
            if not isinstance(off, int):
                off = pl.multiple_of(off, 128)
            qc = sb_ref[0, :, pl.ds(off, tq)]          # (Cn, tq)
            v2c = sb_ref[1, :, pl.ds(off, tq)]         # (Cn, tq)
            key = fa_ref[0]                            # (Cn, HW_pad)
            v1 = fa_ref[1]
            # att_t[q, p] = sum_c qry[c, q] * key[c, p]  (no explicit transpose)
            att_t = lax.dot_general(qc, key, dn_t,
                                    preferred_element_type=jnp.float32)  # (tq, HW_pad)
            val_t = lax.dot_general(v2c, v1, dn_t,
                                    preferred_element_type=jnp.float32)  # (tq, HW_pad)
            if bias is not None:                       # padded q rows -> -1e30
                att_t = att_t + bias
            m_new = jnp.maximum(m, jnp.max(att_t, axis=0, keepdims=True))
            e = jnp.exp(att_t - m_new)                 # padded rows underflow to 0
            alpha = jnp.exp(m - m_new)
            den = alpha * den + jnp.sum(e, axis=0, keepdims=True)
            num = alpha * num + jnp.sum(e * val_t, axis=0, keepdims=True)
            return m_new, den, num

        carry = (jnp.full((1, HW_pad), -1e30, jnp.float32),   # running max
                 jnp.zeros((1, HW_pad), jnp.float32),          # denominator
                 jnp.zeros((1, HW_pad), jnp.float32))          # numerator
        if n_main > 0:
            carry = lax.fori_loop(0, n_main,
                                  lambda ci, c: chunk_update(ci, c, None),
                                  carry, unroll=n_main <= 4)
        if need_mask:
            # Only the last chunk can hold padded q rows (padding < 128 <= tq).
            q_ids = (n_chunks - 1) * tq + lax.broadcasted_iota(jnp.int32, (tq, 1), 0)
            bias = jnp.where(q_ids < HW, 0.0, -1e30).astype(jnp.float32)
            carry = chunk_update(n_chunks - 1, carry, bias)
        _, den, num = carry

        # res[p] = sum_q softmax(att)[p, q] * val[p, q] = num / den
        r = num * pl.reciprocal(den, approx=True)              # (1, HW_pad)
        # conv5 (head_count -> inplanes): VPU broadcast MAC with this head's column.
        contrib = w5_ref[0] * r                                 # (C, 1)*(1, HW_pad)

        n_id = pl.program_id(1)

        @pl.when(n_id == 0)
        def _():
            o_ref[0] = contrib

        @pl.when(n_id > 0)
        def _():
            o_ref[0] = o_ref[0] + contrib

        @pl.when(n_id == pl.num_programs(1) - 1)
        def _():
            o_ref[0] = jnp.maximum(o_ref[0], 0.0)               # fused ReLU

    return kernel


def _pick_tq(hw_pad, tq_max):
    """Largest multiple of 128 that divides hw_pad and is <= max(tq_max, 128)."""
    tq_max = max(128, min(tq_max, hw_pad))
    best = 128
    t = 128
    while t <= tq_max:
        if hw_pad % t == 0:
            best = t
        t += 128
    return best


def siamese_attention_plus(first, second, params, head_count=1, tq_max=256,
                           vmem_limit_bytes=64 * 1024 * 1024):
    """first, second: (B, C, H, W) NCHW float32.  Returns (B, C, H, W) float32."""
    w1, w2, w3, w4, w5 = params
    B, C, H, W = first.shape
    N = head_count
    assert C % N == 0
    Cn = C // N
    HW = H * W
    HW_pad = 128 * pl.cdiv(HW, 128)              # lane-dense spatial axis
    tq = _pick_tq(HW_pad, tq_max)

    # bf16 MXU operands (f32 accumulation in-kernel); cast + zero-pad once on host.
    f = first.reshape(B, N, Cn, HW).astype(jnp.bfloat16)
    s = second.reshape(B, N, Cn, HW).astype(jnp.bfloat16)
    if HW_pad != HW:
        pad = ((0, 0), (0, 0), (0, 0), (0, HW_pad - HW))
        f = jnp.pad(f, pad)
        s = jnp.pad(s, pad)

    # Stack the four 1x1-conv weights: wa @ f -> [key; v1], wb @ s -> [qry; v2].
    wa = jnp.concatenate([w1, w3], axis=0).astype(jnp.bfloat16)   # (2Cn, Cn)
    wb = jnp.concatenate([w2, w4], axis=0).astype(jnp.bfloat16)   # (2Cn, Cn)
    # conv5 weight as one (C, 1) column per head (indexed by the grid n axis);
    # kept f32 for the VPU accumulation path.
    w5h = jnp.transpose(w5).reshape(N, C, 1).astype(jnp.float32)

    kernel = _make_fused_kernel(Cn, C, HW, HW_pad, tq)

    out = pl.pallas_call(
        kernel,
        out_shape=jax.ShapeDtypeStruct((B, C, HW_pad), jnp.float32),
        grid_spec=pltpu.PrefetchScalarGridSpec(
            num_scalar_prefetch=0,
            grid=(B, N),                          # heads on the grid (innermost axis)
            in_specs=[
                pl.BlockSpec((1, 1, Cn, HW_pad), lambda b, n: (b, n, 0, 0)),
                pl.BlockSpec((1, 1, Cn, HW_pad), lambda b, n: (b, n, 0, 0)),
                pl.BlockSpec((2 * Cn, Cn), lambda b, n: (0, 0)),
                pl.BlockSpec((2 * Cn, Cn), lambda b, n: (0, 0)),
                pl.BlockSpec((1, C, 1), lambda b, n: (n, 0, 0)),
            ],
            # Same output block across n -> output-resident conv5 accumulator.
            out_specs=pl.BlockSpec((1, C, HW_pad), lambda b, n: (b, 0, 0)),
            scratch_shapes=[
                pltpu.VMEM((2, Cn, HW_pad), jnp.bfloat16),   # [key; value1]
                pltpu.VMEM((2, Cn, HW_pad), jnp.bfloat16),   # [query; value2]
            ],
        ),
        compiler_params=pltpu.CompilerParams(
            dimension_semantics=("parallel", "arbitrary"),
            vmem_limit_bytes=vmem_limit_bytes),
    )(f, s, wa, wb, w5h)

    if HW_pad != HW:
        out = out[:, :, :HW]
    return out.reshape(B, C, H, W)


def _reference(first, second, params, head_count=1):
    """Pure-JAX f32/HIGHEST reference mirroring the PyTorch forward pass."""
    w1, w2, w3, w4, w5 = params
    B, C, H, W = first.shape
    N = head_count
    Cn = C // N
    HW = H * W
    hi = jax.lax.Precision.HIGHEST

    f = first.reshape(B * N, Cn, HW)
    s = second.reshape(B * N, Cn, HW)
    key = jnp.einsum('oi,bis->bos', w1, f, precision=hi)
    qry = jnp.einsum('oi,bis->bos', w2, s, precision=hi)
    v1 = jnp.einsum('oi,bis->bos', w3, f, precision=hi)
    v2 = jnp.einsum('oi,bis->bos', w4, s, precision=hi)
    att = jnp.einsum('bcp,bcq->bpq', key, qry, precision=hi)
    att = jax.nn.softmax(att, axis=2)
    val = jnp.einsum('bcp,bcq->bpq', v1, v2, precision=hi)
    res = jnp.sum(att * val, axis=2)                     # (B*N, HW)
    res = res.reshape(B, N, HW)
    out = jnp.einsum('cn,bns->bcs', w5, res, precision=hi)
    return jnp.maximum(out, 0.0).reshape(B, C, H, W)


def _make_params(key, C, N):
    Cn = C // N
    k1, k2, k3, k4, k5 = jax.random.split(key, 5)
    scale = 1.0 / jnp.sqrt(Cn)
    w1 = jax.random.uniform(k1, (Cn, Cn), jnp.float32, -scale, scale)
    w2 = jax.random.uniform(k2, (Cn, Cn), jnp.float32, -scale, scale)
    w3 = jax.random.uniform(k3, (Cn, Cn), jnp.float32, -scale, scale)
    w4 = jax.random.uniform(k4, (Cn, Cn), jnp.float32, -scale, scale)
    w5 = jax.random.uniform(k5, (C, N), jnp.float32, -1.0, 1.0)
    return (w1, w2, w3, w4, w5)


def _run_case(key, B, C, H, W, head_count, tq_max=256):
    kx, ky, kp = jax.random.split(key, 3)
    first = jax.random.normal(kx, (B, C, H, W), jnp.float32)
    second = jax.random.normal(ky, (B, C, H, W), jnp.float32)
    params = _make_params(kp, C, head_count)

    out = jax.block_until_ready(
        siamese_attention_plus(first, second, params,
                               head_count=head_count, tq_max=tq_max))
    ref = jax.block_until_ready(
        _reference(first, second, params, head_count=head_count))
    assert out.shape == (B, C, H, W)
    err = float(jnp.max(jnp.abs(out - ref)))
    # Tolerance reflects bf16 MXU operands (f32 accumulation) vs an f32/HIGHEST
    # reference; softmax / accumulation inside the kernel are full f32.
    assert jnp.allclose(out, ref, rtol=2e-2, atol=2e-2), err
    return err


if __name__ == "__main__":
    root = jax.random.PRNGKey(0)
    k1, k2, k3, k4 = jax.random.split(root, 4)
    # Lane-dense case (HW = 256), module-default head_count=1, single q-chunk.
    _run_case(k1, B=2, C=8, H=16, W=16, head_count=1)
    # Padded/masked case (HW = 64 -> 128 lanes), multi-head accumulator (Cn = 4).
    _run_case(k2, B=2, C=8, H=8, W=8, head_count=2)
    # Multi-chunk fori_loop online-softmax path (HW_pad = 256, tq = 128 -> 2 chunks).
    _run_case(k3, B=2, C=8, H=16, W=16, head_count=1, tq_max=128)
    # Multi-chunk + masked last chunk + multi-head (HW = 144 -> 256, 2 chunks).
    _run_case(k4, B=2, C=8, H=12, W=12, head_count=2, tq_max=128)
    print("KERNEL_OK")
</pallas_src>

<mosaic_0001>
module attributes {stable_mosaic.version = 11 : i64} {
  func.func @kernel(%arg0: i32, %arg1: i32, %arg2: memref<1x1x8x256xbf16, #tpu.memory_space<vmem>>, %arg3: memref<1x1x8x256xbf16, #tpu.memory_space<vmem>>, %arg4: memref<16x8xbf16, #tpu.memory_space<vmem>>, %arg5: memref<16x8xbf16, #tpu.memory_space<vmem>>, %arg6: memref<1x8x1xf32, #tpu.memory_space<vmem>>, %arg7: memref<1x8x256xf32, #tpu.memory_space<vmem>>, %arg8: memref<2x8x256xbf16, #tpu.memory_space<vmem>>, %arg9: memref<2x8x256xbf16, #tpu.memory_space<vmem>>) attributes {dimension_semantics = [#tpu.dimension_semantics<parallel>, #tpu.dimension_semantics<arbitrary>], iteration_bounds = array<i64: 2, 1>, scalar_prefetch = 0 : i64, scratch_operands = 2 : i64, tpu.core_type = #tpu.core_type<tc>, window_params = [{transform_indices = @transform_0, window_bounds = array<i64: 1, 1, 8, 256>}, {transform_indices = @transform_1, window_bounds = array<i64: 1, 1, 8, 256>}, {pipeline_mode = #tpu.pipeline_mode<synchronous>, transform_indices = @transform_2, window_bounds = array<i64: 16, 8>}, {pipeline_mode = #tpu.pipeline_mode<synchronous>, transform_indices = @transform_3, window_bounds = array<i64: 16, 8>}, {transform_indices = @transform_4, window_bounds = array<i64: 1, 8, 1>}, {transform_indices = @transform_5, window_bounds = array<i64: 1, 8, 256>}]} {
    %c0 = arith.constant 0 : index
    %c0_0 = arith.constant 0 : index
    %0 = vector.load %arg4[%c0, %c0_0] : memref<16x8xbf16, #tpu.memory_space<vmem>>, vector<16x8xbf16>
    %c0_1 = arith.constant 0 : index
    %c0_2 = arith.constant 0 : index
    %c0_3 = arith.constant 0 : index
    %c0_4 = arith.constant 0 : index
    %1 = vector.load %arg2[%c0_1, %c0_2, %c0_3, %c0_4] : memref<1x1x8x256xbf16, #tpu.memory_space<vmem>>, vector<1x1x8x256xbf16>
    %2 = vector.shape_cast %1 : vector<1x1x8x256xbf16> to vector<8x256xbf16>
    %cst = arith.constant dense<0.000000e+00> : vector<16x256xf32>
    %3 = tpu.matmul %0, %2, %cst {dimension_numbers = #tpu.dot_dimension_numbers<[1], [0], [0], [1], [0, 0, 1, 1], [], []>} : vector<16x8xbf16>, vector<8x256xbf16>, vector<16x256xf32> -> vector<16x256xf32>
    %4 = vector.extract_strided_slice %3 {offsets = [0, 0], sizes = [8, 256], strides = [1, 1]} : vector<16x256xf32> to vector<8x256xf32>
    %5 = arith.truncf %4 : vector<8x256xf32> to vector<8x256xbf16>
    %c0_5 = arith.constant 0 : index
    %c0_6 = arith.constant 0 : index
    %c0_7 = arith.constant 0 : index
    %6 = vector.load %arg8[%c0_5, %c0_6, %c0_7] : memref<2x8x256xbf16, #tpu.memory_space<vmem>>, vector<1x8x256xbf16>
    %7 = vector.shape_cast %6 : vector<1x8x256xbf16> to vector<8x256xbf16>
    %8 = vector.shape_cast %5 : vector<8x256xbf16> to vector<1x8x256xbf16>
    tpu.vector_store %arg8[%c0_5, %c0_6, %c0_7], %8 {strides = array<i32>} : memref<2x8x256xbf16, #tpu.memory_space<vmem>>, vector<1x8x256xbf16>,
    %9 = vector.extract_strided_slice %3 {offsets = [8, 0], sizes = [8, 256], strides = [1, 1]} : vector<16x256xf32> to vector<8x256xf32>
    %10 = arith.truncf %9 : vector<8x256xf32> to vector<8x256xbf16>
    %c1 = arith.constant 1 : index
    %c0_8 = arith.constant 0 : index
    %c0_9 = arith.constant 0 : index
    %11 = vector.load %arg8[%c1, %c0_8, %c0_9] : memref<2x8x256xbf16, #tpu.memory_space<vmem>>, vector<1x8x256xbf16>
    %12 = vector.shape_cast %11 : vector<1x8x256xbf16> to vector<8x256xbf16>
    %13 = vector.shape_cast %10 : vector<8x256xbf16> to vector<1x8x256xbf16>
    tpu.vector_store %arg8[%c1, %c0_8, %c0_9], %13 {strides = array<i32>} : memref<2x8x256xbf16, #tpu.memory_space<vmem>>, vector<1x8x256xbf16>,
    %c0_10 = arith.constant 0 : index
    %c0_11 = arith.constant 0 : index
    %14 = vector.load %arg5[%c0_10, %c0_11] : memref<16x8xbf16, #tpu.memory_space<vmem>>, vector<16x8xbf16>
    %c0_12 = arith.constant 0 : index
    %c0_13 = arith.constant 0 : index
    %c0_14 = arith.constant 0 : index
    %c0_15 = arith.constant 0 : index
    %15 = vector.load %arg3[%c0_12, %c0_13, %c0_14, %c0_15] : memref<1x1x8x256xbf16, #tpu.memory_space<vmem>>, vector<1x1x8x256xbf16>
    %16 = vector.shape_cast %15 : vector<1x1x8x256xbf16> to vector<8x256xbf16>
    %cst_16 = arith.constant dense<0.000000e+00> : vector<16x256xf32>
    %17 = tpu.matmul %14, %16, %cst_16 {dimension_numbers = #tpu.dot_dimension_numbers<[1], [0], [0], [1], [0, 0, 1, 1], [], []>} : vector<16x8xbf16>, vector<8x256xbf16>, vector<16x256xf32> -> vector<16x256xf32>
    %18 = vector.extract_strided_slice %17 {offsets = [0, 0], sizes = [8, 256], strides = [1, 1]} : vector<16x256xf32> to vector<8x256xf32>
    %19 = arith.truncf %18 : vector<8x256xf32> to vector<8x256xbf16>
    %c0_17 = arith.constant 0 : index
    %c0_18 = arith.constant 0 : index
    %c0_19 = arith.constant 0 : index
    %20 = vector.load %arg9[%c0_17, %c0_18, %c0_19] : memref<2x8x256xbf16, #tpu.memory_space<vmem>>, vector<1x8x256xbf16>
    %21 = vector.shape_cast %20 : vector<1x8x256xbf16> to vector<8x256xbf16>
    %22 = vector.shape_cast %19 : vector<8x256xbf16> to vector<1x8x256xbf16>
    tpu.vector_store %arg9[%c0_17, %c0_18, %c0_19], %22 {strides = array<i32>} : memref<2x8x256xbf16, #tpu.memory_space<vmem>>, vector<1x8x256xbf16>,
    %23 = vector.extract_strided_slice %17 {offsets = [8, 0], sizes = [8, 256], strides = [1, 1]} : vector<16x256xf32> to vector<8x256xf32>
    %24 = arith.truncf %23 : vector<8x256xf32> to vector<8x256xbf16>
    %c1_20 = arith.constant 1 : index
    %c0_21 = arith.constant 0 : index
    %c0_22 = arith.constant 0 : index
    %25 = vector.load %arg9[%c1_20, %c0_21, %c0_22] : memref<2x8x256xbf16, #tpu.memory_space<vmem>>, vector<1x8x256xbf16>
    %26 = vector.shape_cast %25 : vector<1x8x256xbf16> to vector<8x256xbf16>
    %27 = vector.shape_cast %24 : vector<8x256xbf16> to vector<1x8x256xbf16>
    tpu.vector_store %arg9[%c1_20, %c0_21, %c0_22], %27 {strides = array<i32>} : memref<2x8x256xbf16, #tpu.memory_space<vmem>>, vector<1x8x256xbf16>,
    %cst_23 = arith.constant -1.000000e+30 : f32
    %28 = vector.broadcast %cst_23 : f32 to vector<1x256xf32>
    %cst_24 = arith.constant 0.000000e+00 : f32
    %29 = vector.broadcast %cst_24 : f32 to vector<1x256xf32>
    %cst_25 = arith.constant 0.000000e+00 : f32
    %30 = vector.broadcast %cst_25 : f32 to vector<1x256xf32>
    %c0_i32 = arith.constant 0 : i32
    %c256_i32 = arith.constant 256 : i32
    %31 = arith.muli %c0_i32, %c256_i32 : i32
    %32 = tpu.assume_multiple %31, 128 : i32
    %c0_26 = arith.constant 0 : index
    %c0_27 = arith.constant 0 : index
    %33 = arith.index_cast %32 : i32 to index
    %34 = vector.load %arg9[%c0_26, %c0_27, %33] : memref<2x8x256xbf16, #tpu.memory_space<vmem>>, vector<1x8x256xbf16>
    %35 = vector.shape_cast %34 : vector<1x8x256xbf16> to vector<8x256xbf16>
    %c1_28 = arith.constant 1 : index
    %c0_29 = arith.constant 0 : index
    %36 = arith.index_cast %32 : i32 to index
    %37 = vector.load %arg9[%c1_28, %c0_29, %36] : memref<2x8x256xbf16, #tpu.memory_space<vmem>>, vector<1x8x256xbf16>
    %38 = vector.shape_cast %37 : vector<1x8x256xbf16> to vector<8x256xbf16>
    %c0_30 = arith.constant 0 : index
    %c0_31 = arith.constant 0 : index
    %c0_32 = arith.constant 0 : index
    %39 = vector.load %arg8[%c0_30, %c0_31, %c0_32] : memref<2x8x256xbf16, #tpu.memory_space<vmem>>, vector<1x8x256xbf16>
    %40 = vector.shape_cast %39 : vector<1x8x256xbf16> to vector<8x256xbf16>
    %c1_33 = arith.constant 1 : index
    %c0_34 = arith.constant 0 : index
    %c0_35 = arith.constant 0 : index
    %41 = vector.load %arg8[%c1_33, %c0_34, %c0_35] : memref<2x8x256xbf16, #tpu.memory_space<vmem>>, vector<1x8x256xbf16>
    %42 = vector.shape_cast %41 : vector<1x8x256xbf16> to vector<8x256xbf16>
    %cst_36 = arith.constant dense<0.000000e+00> : vector<256x256xf32>
    %43 = tpu.matmul %35, %40, %cst_36 {dimension_numbers = #tpu.dot_dimension_numbers<[0], [0], [1], [1], [0, 1, 1, 1], [], []>} : vector<8x256xbf16>, vector<8x256xbf16>, vector<256x256xf32> -> vector<256x256xf32>
    %cst_37 = arith.constant dense<0.000000e+00> : vector<256x256xf32>
    %44 = tpu.matmul %38, %42, %cst_37 {dimension_numbers = #tpu.dot_dimension_numbers<[0], [0], [1], [1], [0, 1, 1, 1], [], []>} : vector<8x256xbf16>, vector<8x256xbf16>, vector<256x256xf32> -> vector<256x256xf32>
    %cst_38 = arith.constant dense<0xFF800000> : vector<256xf32>
    %45 = vector.multi_reduction <maximumf>, %43, %cst_38 [0] : vector<256x256xf32> to vector<256xf32>
    %46 = vector.shape_cast %45 : vector<256xf32> to vector<1x256xf32>
    %47 = arith.maximumf %28, %46 : vector<1x256xf32>
    %48 = vector.broadcast %47 : vector<1x256xf32> to vector<256x256xf32>
    %49 = arith.subf %43, %48 : vector<256x256xf32>
    %50 = math.exp %49 : vector<256x256xf32>
    %51 = arith.subf %28, %47 : vector<1x256xf32>
    %52 = math.exp %51 : vector<1x256xf32>
    %53 = arith.mulf %52, %29 : vector<1x256xf32>
    %cst_39 = arith.constant dense<0.000000e+00> : vector<256xf32>
    %54 = vector.multi_reduction <add>, %50, %cst_39 [0] : vector<256x256xf32> to vector<256xf32>
    %55 = vector.shape_cast %54 : vector<256xf32> to vector<1x256xf32>
    %56 = arith.addf %53, %55 : vector<1x256xf32>
    %57 = arith.mulf %52, %30 : vector<1x256xf32>
    %58 = arith.mulf %50, %44 : vector<256x256xf32>
    %cst_40 = arith.constant dense<0.000000e+00> : vector<256xf32>
    %59 = vector.multi_reduction <add>, %58, %cst_40 [0] : vector<256x256xf32> to vector<256xf32>
    %60 = vector.shape_cast %59 : vector<256xf32> to vector<1x256xf32>
    %61 = arith.addf %57, %60 : vector<1x256xf32>
    %c1_i32 = arith.constant 1 : i32
    %62 = tpu.reciprocal %56 {approx = true} : vector<1x256xf32> -> vector<1x256xf32>
    %63 = arith.mulf %61, %62 : vector<1x256xf32>
    %c0_41 = arith.constant 0 : index
    %c0_42 = arith.constant 0 : index
    %c0_43 = arith.constant 0 : index
    %64 = vector.load %arg6[%c0_41, %c0_42, %c0_43] : memref<1x8x1xf32, #tpu.memory_space<vmem>>, vector<1x8x1xf32>
    %65 = vector.shape_cast %64 : vector<1x8x1xf32> to vector<8x1xf32>
    %66 = vector.broadcast %65 : vector<8x1xf32> to vector<8x256xf32>
    %67 = vector.broadcast %63 : vector<1x256xf32> to vector<8x256xf32>
    %68 = arith.mulf %66, %67 : vector<8x256xf32>
    %c0_i32_44 = arith.constant 0 : i32
    %69 = arith.cmpi eq, %arg1, %c0_i32_44 : i32
    %70 = arith.extui %69 : i1 to i32
    %c0_i32_45 = arith.constant 0 : i32
    %71 = arith.cmpi ne, %70, %c0_i32_45 : i32
    scf.if %71 {
      %c0_50 = arith.constant 0 : index
      %c0_51 = arith.constant 0 : index
      %c0_52 = arith.constant 0 : index
      %78 = vector.load %arg7[%c0_50, %c0_51, %c0_52] : memref<1x8x256xf32, #tpu.memory_space<vmem>>, vector<1x8x256xf32>
      %79 = vector.shape_cast %78 : vector<1x8x256xf32> to vector<8x256xf32>
      %80 = vector.shape_cast %68 : vector<8x256xf32> to vector<1x8x256xf32>
      tpu.vector_store %arg7[%c0_50, %c0_51, %c0_52], %80 {strides = array<i32>} : memref<1x8x256xf32, #tpu.memory_space<vmem>>, vector<1x8x256xf32>,
    } else {
    }
    %c0_i32_46 = arith.constant 0 : i32
    %72 = arith.cmpi sgt, %arg1, %c0_i32_46 : i32
    %73 = arith.extui %72 : i1 to i32
    %c0_i32_47 = arith.constant 0 : i32
    %74 = arith.cmpi ne, %73, %c0_i32_47 : i32
    scf.if %74 {
      %c0_50 = arith.constant 0 : index
      %c0_51 = arith.constant 0 : index
      %c0_52 = arith.constant 0 : index
      %78 = vector.load %arg7[%c0_50, %c0_51, %c0_52] : memref<1x8x256xf32, #tpu.memory_space<vmem>>, vector<1x8x256xf32>
      %79 = vector.shape_cast %78 : vector<1x8x256xf32> to vector<8x256xf32>
      %80 = arith.addf %79, %68 : vector<8x256xf32>
      %c0_53 = arith.constant 0 : index
      %c0_54 = arith.constant 0 : index
      %c0_55 = arith.constant 0 : index
      %81 = vector.load %arg7[%c0_53, %c0_54, %c0_55] : memref<1x8x256xf32, #tpu.memory_space<vmem>>, vector<1x8x256xf32>
      %82 = vector.shape_cast %81 : vector<1x8x256xf32> to vector<8x256xf32>
      %83 = vector.shape_cast %80 : vector<8x256xf32> to vector<1x8x256xf32>
      tpu.vector_store %arg7[%c0_53, %c0_54, %c0_55], %83 {strides = array<i32>} : memref<1x8x256xf32, #tpu.memory_space<vmem>>, vector<1x8x256xf32>,
    } else {
    }
    %c0_i32_48 = arith.constant 0 : i32
    %75 = arith.cmpi eq, %arg1, %c0_i32_48 : i32
    %76 = arith.extui %75 : i1 to i32
    %c0_i32_49 = arith.constant 0 : i32
    %77 = arith.cmpi ne, %76, %c0_i32_49 : i32
    scf.if %77 {
      %c0_50 = arith.constant 0 : index
      %c0_51 = arith.constant 0 : index
      %c0_52 = arith.constant 0 : index
      %78 = vector.load %arg7[%c0_50, %c0_51, %c0_52] : memref<1x8x256xf32, #tpu.memory_space<vmem>>, vector<1x8x256xf32>
      %79 = vector.shape_cast %78 : vector<1x8x256xf32> to vector<8x256xf32>
      %cst_53 = arith.constant 0.000000e+00 : f32
      %80 = vector.broadcast %cst_53 : f32 to vector<8x256xf32>
      %81 = arith.maximumf %79, %80 : vector<8x256xf32>
      %c0_54 = arith.constant 0 : index
      %c0_55 = arith.constant 0 : index
      %c0_56 = arith.constant 0 : index
      %82 = vector.load %arg7[%c0_54, %c0_55, %c0_56] : memref<1x8x256xf32, #tpu.memory_space<vmem>>, vector<1x8x256xf32>
      %83 = vector.shape_cast %82 : vector<1x8x256xf32> to vector<8x256xf32>
      %84 = vector.shape_cast %81 : vector<8x256xf32> to vector<1x8x256xf32>
      tpu.vector_store %arg7[%c0_54, %c0_55, %c0_56], %84 {strides = array<i32>} : memref<1x8x256xf32, #tpu.memory_space<vmem>>, vector<1x8x256xf32>,
    } else {
    }
    return
  }
  func.func @transform_0(%arg0: i32, %arg1: i32) -> (i32, i32, i32, i32) {
    %c0_i32 = arith.constant 0 : i32
    %c0_i32_0 = arith.constant 0 : i32
    %c0_i32_1 = arith.constant 0 : i32
    return %arg0, %arg1, %c0_i32, %c0_i32_0 : i32, i32, i32, i32
  }
  func.func @transform_1(%arg0: i32, %arg1: i32) -> (i32, i32, i32, i32) {
    %c0_i32 = arith.constant 0 : i32
    %c0_i32_0 = arith.constant 0 : i32
    %c0_i32_1 = arith.constant 0 : i32
    return %arg0, %arg1, %c0_i32, %c0_i32_0 : i32, i32, i32, i32
  }
  func.func @transform_2(%arg0: i32, %arg1: i32) -> (i32, i32) {
    %c0_i32 = arith.constant 0 : i32
    %c0_i32_0 = arith.constant 0 : i32
    %c0_i32_1 = arith.constant 0 : i32
    return %c0_i32, %c0_i32_0 : i32, i32
  }
  func.func @transform_3(%arg0: i32, %arg1: i32) -> (i32, i32) {
    %c0_i32 = arith.constant 0 : i32
    %c0_i32_0 = arith.constant 0 : i32
    %c0_i32_1 = arith.constant 0 : i32
    return %c0_i32, %c0_i32_0 : i32, i32
  }
  func.func @transform_4(%arg0: i32, %arg1: i32) -> (i32, i32, i32) {
    %c0_i32 = arith.constant 0 : i32
    %c0_i32_0 = arith.constant 0 : i32
    %c0_i32_1 = arith.constant 0 : i32
    return %arg1, %c0_i32, %c0_i32_0 : i32, i32, i32
  }
  func.func @transform_5(%arg0: i32, %arg1: i32) -> (i32, i32, i32) {
    %c0_i32 = arith.constant 0 : i32
    %c0_i32_0 = arith.constant 0 : i32
    %c0_i32_1 = arith.constant 0 : i32
    return %arg0, %c0_i32, %c0_i32_0 : i32, i32, i32
  }
}

</mosaic_0001>

<llo_original>
// kernel: tpu_custom_call.1
$region0: #{tpu_custom_call.1}
  #allocation0 [shape = 'u32[]', space=smem, size = 0x4, offset = 0x4, fixed_abs, tag = 'smem constant byte address 0x4 - core index']
  #allocation1 [shape = 'u32[144,128]{1,0:T(1,128)}', space=vmem, size = 0x12000, scoped, tag = 'internal scratch']
  #allocation2 [shape = 'bf16[2,8,256]{2,1,0:T(8,128)(2,1)}', space=vmem, size = 0x2000, scoped, tag = 'scratch operand']
  #allocation3 [shape = 'bf16[2,8,256]{2,1,0:T(8,128)(2,1)}', space=vmem, size = 0x2000, scoped, tag = 'scratch operand']
  %s0 = inlined_call_operand.hbm [shape: bf16[2,1,8,256], index: 0, kind: input, shape index: {}]
  %s1 = inlined_call_operand.hbm [shape: bf16[2,1,8,256], index: 1, kind: input, shape index: {}]
  %s2 = inlined_call_operand.hbm [shape: bf16[16,8], index: 2, kind: input, shape index: {}]
  %s3 = inlined_call_operand.hbm [shape: bf16[16,8], index: 3, kind: input, shape index: {}]
  %s4 = inlined_call_operand.hbm [shape: f32[1,8,1], index: 4, kind: input, shape index: {}]
  %s5 = inlined_call_operand.hbm [shape: f32[2,8,256], index: 5, kind: output, shape index: {}]
  %s6 = sld [smem:[#allocation0]]
  $region85: #{tpu_custom_call.1} parent=0
    _
  %s8 = ssub.s32 1, %s6
  %s9 = scalar_select 0, %s8, %s6
  $region1: #{tpu_custom_call.1} parent=0
    #allocation4 [shape = 'u8[8192]{0}', space=vmem, size = 0x2000, scoped, tag = 'input window, operand 0']
    #allocation5 [shape = 's32[2]{0}', space=sflag, size = 0x8, scoped, tag = 'scoped memory for tpu_custom_call.1']
    #allocation6 [shape = 's32[2]{0}', space=sflag, size = 0x8, scoped, tag = 'scoped memory for tpu_custom_call.1']
    #allocation7 [shape = 'u8[8192]{0}', space=vmem, size = 0x2000, scoped, tag = 'input window, operand 1']
    #allocation8 [shape = 's32[2]{0}', space=sflag, size = 0x8, scoped, tag = 'scoped memory for tpu_custom_call.1']
    #allocation9 [shape = 'u8[4096]{0}', space=vmem, size = 0x1000, scoped, tag = 'input window, operand 2, single buffered']
    #allocation10 [shape = 'u8[4096]{0}', space=vmem, size = 0x1000, scoped, tag = 'input window, operand 3, single buffered']
    #allocation11 [shape = 's32[1]{0}', space=sflag, size = 0x4, scoped, tag = 'scoped memory for tpu_custom_call.1']
    #allocation12 [shape = 'u8[4096]{0}', space=vmem, size = 0x1000, scoped, tag = 'input window, operand 4, single buffered']
    #allocation13 [shape = 'u8[16384]{0}', space=vmem, size = 0x4000, scoped, tag = 'output window, operand 0']
    %10 = vsyncpa [#allocation5], 0
    %s11 = scalar_lea.sflag [#allocation5], 1
    %12 = vsyncpa %s11, 0
    %13 = vsyncpa [#allocation8], 0
    %s14 = scalar_lea.sflag [#allocation8], 1
    %15 = vsyncpa %s14, 0
    %16 = vsyncpa [#allocation11], 0
    %17 = vsyncpa [#allocation6], 0
    %s18 = scalar_lea.sflag [#allocation6], 1
    %19 = vsyncpa %s18, 0
    loop: start=0, step=1, limit=4
    $region2: #{tpu_custom_call.1} parent=1 // loop_pre_header
      _
    $region3: #{tpu_custom_call.1} parent=1 // loop_header
      %s21 = sphi 0, %s25
      %p22 = scmp.ge.s32.totalorder %s21, 4
      %s28 = sphi 0, %s40
      %s29 = sphi 0, %s36
      %s30 = sphi 0, %s28
      %s31 = sphi 0, %s29
      %s32 = sphi 0, %s30
      %s33 = sphi 0, %s31
      %s45 = sphi 0, %s47
      %s48 = sphi 0, %s45
      %s49 = sphi 0, %s48
      %s65 = sphi 0, %s49
      %s73 = sphi 0, %s75
      %s76 = sphi 0, %s73
      %s77 = sphi 0, %s76
      %s93 = sphi 0, %s77
      %s97 = sphi 0, %s97
      %s99 = sphi 0, %s97
      %s100 = sphi 0, %s99
      %s114 = sphi 0, %s100
      %s118 = sphi 0, %s118
      %s120 = sphi 0, %s118
      %s121 = sphi 0, %s120
      %s135 = sphi 0, %s121
      %s141 = sphi 0, %s143
      %s144 = sphi 0, %s141
      %s145 = sphi 0, %s144
      %s161 = sphi 0, %s145
      %s167 = sphi 0, %s169
      %s170 = sphi 0, %s167
      %s171 = sphi 0, %s170
      %s187 = sphi 0, %s171
    $region4: #{tpu_custom_call.1} parent=1 // loop_header_branch
      %24 = sbr.rel (%p22) target = $region8
    $region5: #{tpu_custom_call.1} parent=1 // loop_body
      %s26 = ssub.s32 %s21, 1
      %s27 = ssub.s32 %s21, 2
      %s34 = sadd.s32 1, %s29
      %p35 = scmp.ge.s32.totalorder %s34, 1
      %s36 = scalar_select %p35, 0, %s34
      %s37 = sadd.s32 1, %s28
      %s38 = scalar_select %p35, %s37, %s28
      %p39 = scmp.ge.s32.totalorder %s38, 2
      %s40 = scalar_select %p39, 0, %s38
      %s41 = ssub.s32 %s28, %s40
      %s42 = ssub.s32 %s29, %s36
      %s43 = sor.u32 %s41, %s42
      %p44 = scmp.eq.s32.totalorder %s43, 0
      %s46 = sadd.s32 %s45, 1
      %s47 = scalar_select %p44, %s45, %s46
      %p50 = pneg %p44
      %p51 = scmp.eq.s32.totalorder %s21, 1
      %p52 = por %p50, %p51
      %p53 = scmp.ne.s32.totalorder %s45, %s48
      %p54 = scmp.eq.s32.totalorder %s21, 0
      %p55 = por %p53, %p54
      %p56 = scmp.ne.s32.totalorder %s45, %s48
      %p57 = scmp.eq.s32.totalorder %s26, 1
      %p58 = por %p56, %p57
      %p59 = scmp.ne.s32.totalorder %s48, %s49
      %p60 = scmp.eq.s32.totalorder %s26, 0
      %p61 = por %p59, %p60
      %p62 = scmp.ne.s32.totalorder %s48, %s49
      %p63 = scmp.eq.s32.totalorder %s27, 1
      %p64 = por %p62, %p63
      %p66 = scmp.ne.s32.totalorder %s49, %s65
      %p67 = scmp.eq.s32.totalorder %s27, 0
      %p68 = por %p66, %p67
      %s69 = ssub.s32 %s28, %s40
      %s70 = ssub.s32 %s29, %s36
      %s71 = sor.u32 %s69, %s70
      %p72 = scmp.eq.s32.totalorder %s71, 0
      %s74 = sadd.s32 %s73, 1
      %s75 = scalar_select %p72, %s73, %s74
      %p78 = pneg %p72
      %p79 = scmp.eq.s32.totalorder %s21, 1
      %p80 = por %p78, %p79
      %p81 = scmp.ne.s32.totalorder %s73, %s76
      %p82 = scmp.eq.s32.totalorder %s21, 0
      %p83 = por %p81, %p82
      %p84 = scmp.ne.s32.totalorder %s73, %s76
      %p85 = scmp.eq.s32.totalorder %s26, 1
      %p86 = por %p84, %p85
      %p87 = scmp.ne.s32.totalorder %s76, %s77
      %p88 = scmp.eq.s32.totalorder %s26, 0
      %p89 = por %p87, %p88
      %p90 = scmp.ne.s32.totalorder %s76, %s77
      %p91 = scmp.eq.s32.totalorder %s27, 1
      %p92 = por %p90, %p91
      %p94 = scmp.ne.s32.totalorder %s77, %s93
      %p95 = scmp.eq.s32.totalorder %s27, 0
      %p96 = por %p94, %p95
      %s98 = sadd.s32 %s97, 1
      %p101 = scmp.eq.s32.totalorder %s21, 1
      %p102 = scmp.ne.s32.totalorder %s97, %s99
      %p103 = scmp.eq.s32.totalorder %s21, 0
      %p104 = por %p102, %p103
      %p105 = scmp.ne.s32.totalorder %s97, %s99
      %p106 = scmp.eq.s32.totalorder %s26, 1
      %p107 = por %p105, %p106
      %p108 = scmp.ne.s32.totalorder %s99, %s100
      %p109 = scmp.eq.s32.totalorder %s26, 0
      %p110 = por %p108, %p109
      %p111 = scmp.ne.s32.totalorder %s99, %s100
      %p112 = scmp.eq.s32.totalorder %s27, 1
      %p113 = por %p111, %p112
      %p115 = scmp.ne.s32.totalorder %s100, %s114
      %p116 = scmp.eq.s32.totalorder %s27, 0
      %p117 = por %p115, %p116
      %s119 = sadd.s32 %s118, 1
      %p122 = scmp.eq.s32.totalorder %s21, 1
      %p123 = scmp.ne.s32.totalorder %s118, %s120
      %p124 = scmp.eq.s32.totalorder %s21, 0
      %p125 = por %p123, %p124
      %p126 = scmp.ne.s32.totalorder %s118, %s120
      %p127 = scmp.eq.s32.totalorder %s26, 1
      %p128 = por %p126, %p127
      %p129 = scmp.ne.s32.totalorder %s120, %s121
      %p130 = scmp.eq.s32.totalorder %s26, 0
      %p131 = por %p129, %p130
      %p132 = scmp.ne.s32.totalorder %s120, %s121
      %p133 = scmp.eq.s32.totalorder %s27, 1
      %p134 = por %p132, %p133
      %p136 = scmp.ne.s32.totalorder %s121, %s135
      %p137 = scmp.eq.s32.totalorder %s27, 0
      %p138 = por %p136, %p137
      %s139 = ssub.s32 %s29, %s36
      %p140 = scmp.eq.s32.totalorder %s139, 0
      %s142 = sadd.s32 %s141, 1
      %s143 = scalar_select %p140, %s141, %s142
      %p146 = pneg %p140
      %p147 = scmp.eq.s32.totalorder %s21, 1
      %p148 = por %p146, %p147
      %p149 = scmp.ne.s32.totalorder %s141, %s144
      %p150 = scmp.eq.s32.totalorder %s21, 0
      %p151 = por %p149, %p150
      %p152 = scmp.ne.s32.totalorder %s141, %s144
      %p153 = scmp.eq.s32.totalorder %s26, 1
      %p154 = por %p152, %p153
      %p155 = scmp.ne.s32.totalorder %s144, %s145
      %p156 = scmp.eq.s32.totalorder %s26, 0
      %p157 = por %p155, %p156
      %p158 = scmp.ne.s32.totalorder %s144, %s145
      %p159 = scmp.eq.s32.totalorder %s27, 1
      %p160 = por %p158, %p159
      %p162 = scmp.ne.s32.totalorder %s145, %s161
      %p163 = scmp.eq.s32.totalorder %s27, 0
      %p164 = por %p162, %p163
      %s165 = ssub.s32 %s28, %s40
      %p166 = scmp.eq.s32.totalorder %s165, 0
      %s168 = sadd.s32 %s167, 1
      %s169 = scalar_select %p166, %s167, %s168
      %p172 = pneg %p166
      %p173 = scmp.eq.s32.totalorder %s21, 1
      %p174 = por %p172, %p173
      %p175 = scmp.ne.s32.totalorder %s167, %s170
      %p176 = scmp.eq.s32.totalorder %s21, 0
      %p177 = por %p175, %p176
      %p178 = scmp.ne.s32.totalorder %s167, %s170
      %p179 = scmp.eq.s32.totalorder %s26, 1
      %p180 = por %p178, %p179
      %p181 = scmp.ne.s32.totalorder %s170, %s171
      %p182 = scmp.eq.s32.totalorder %s26, 0
      %p183 = por %p181, %p182
      %p184 = scmp.ne.s32.totalorder %s170, %s171
      %p185 = scmp.eq.s32.totalorder %s27, 1
      %p186 = por %p184, %p185
      %p188 = scmp.ne.s32.totalorder %s171, %s187
      %p189 = scmp.eq.s32.totalorder %s27, 0
      %p190 = por %p188, %p189
      %p191 = scmp.le.s32.totalorder 1, %s21
      %p192 = scmp.lt.s32.totalorder %s21, 3
      %p193 = pnand %p191, %p192
      %p194 = pneg %p193
      // Predicated region
      $region9: #{tpu_custom_call.1} parent=5 // pred_check
        _
      $region10: #{tpu_custom_call.1} parent=5 // pred_check_branch
        %196 = sbr.rel (%p193) target = $region12
      $region11: #{tpu_custom_call.1} parent=5 // pred_region
        %s197 = ssub.s32 %s21, 1
        // Predicated region
        $region13: #{tpu_custom_call.1} parent=11 // pred_check
          %p198 = pneg %p110
        $region14: #{tpu_custom_call.1} parent=11 // pred_check_branch
          %200 = sbr.rel (%p198) target = $region16
        $region15: #{tpu_custom_call.1} parent=11 // pred_region
          %s202 = ssub.s32 128, 128
          %203 = vsyncadd [#allocation8], %s202
          %s204 = sshll.u32 [#allocation9], 4
          %s205 = int_to_ptr.vmem [resolvable:$true] %s204
          %210 = dma.hbm_to_vmem [thread:$0]  %s2, 128, %s205, [#allocation8], 64, 64, 4
        $region16: #{tpu_custom_call.1} parent=11 // pred_fallthru
          _
        // Predicated region
        $region17: #{tpu_custom_call.1} parent=11 // pred_check
          %p211 = pneg %p131
        $region18: #{tpu_custom_call.1} parent=11 // pred_check_branch
          %213 = sbr.rel (%p211) target = $region20
        $region19: #{tpu_custom_call.1} parent=11 // pred_region
          %s215 = ssub.s32 128, 128
          %216 = vsyncadd [#allocation11], %s215
          %s217 = sshll.u32 [#allocation10], 4
          %s218 = int_to_ptr.vmem [resolvable:$true] %s217
          %223 = dma.hbm_to_vmem [thread:$0]  %s3, 128, %s218, [#allocation11], 64, 64, 4
        $region20: #{tpu_custom_call.1} parent=11 // pred_fallthru
          _
        // Predicated region
        $region21: #{tpu_custom_call.1} parent=11 // pred_check
          %p224 = pneg %p157
        $region22: #{tpu_custom_call.1} parent=11 // pred_check_branch
          %226 = sbr.rel (%p224) target = $region24
        $region23: #{tpu_custom_call.1} parent=11 // pred_region
          %s228 = ssub.s32 128, 128
          %229 = vsyncadd [#allocation11], %s228
          %s230 = smul.addr %s31, 128
          %s231 = scalar_lea.hbm %s4, %s230
          %s233 = sshll.u32 [#allocation12], 4
          %s234 = int_to_ptr.vmem [resolvable:$true] %s233
          %236 = dma.hbm_to_vmem [thread:$0]  %s231, 128, %s234, [#allocation11]
        $region24: #{tpu_custom_call.1} parent=11 // pred_fallthru
          _
      $region12: #{tpu_custom_call.1} parent=5 // pred_fallthru
        _
      %p237 = scmp.lt.s32.totalorder %s21, 2
      // Predicated region
      $region25: #{tpu_custom_call.1} parent=5 // pred_check
        %p238 = pneg %p237
      $region26: #{tpu_custom_call.1} parent=5 // pred_check_branch
        %240 = sbr.rel (%p238) target = $region28
      $region27: #{tpu_custom_call.1} parent=5 // pred_region
        // Predicated region
        $region29: #{tpu_custom_call.1} parent=27 // pred_check
          %p241 = pneg %p55
        $region30: #{tpu_custom_call.1} parent=27 // pred_check_branch
          %243 = sbr.rel (%p241) target = $region32
        $region31: #{tpu_custom_call.1} parent=27 // pred_region
          %s244 = sand.u32 %s45, 1
          %s245 = scalar_lea.sflag [#allocation5], %s244
          %s246 = sand.u32 %s45, 1
          %s247 = smul.addr %s246, 8
          %s248 = scalar_lea.vmem [#allocation4], %s247
          %s250 = ssub.s32 128, 128
          %251 = vsyncadd %s245, %s250
          %s252 = smul.addr %s29, 2
          %s253 = smul.addr %s28, 2
          %s254 = sadd.s32 %s252, %s253
          %s255 = smul.addr %s254, 64
          %s256 = scalar_lea.hbm %s0, %s255
          %s258 = sshll.u32 %s248, 4
          %s259 = int_to_ptr.vmem [resolvable:$true] %s258
          %261 = dma.hbm_to_vmem [thread:$0]  %s256, 128, %s259, %s245
        $region32: #{tpu_custom_call.1} parent=27 // pred_fallthru
          _
        // Predicated region
        $region33: #{tpu_custom_call.1} parent=27 // pred_check
          %p262 = pneg %p83
        $region34: #{tpu_custom_call.1} parent=27 // pred_check_branch
          %264 = sbr.rel (%p262) target = $region36
        $region35: #{tpu_custom_call.1} parent=27 // pred_region
          %s265 = sand.u32 %s21, 1
          %s266 = scalar_lea.sflag [#allocation8], %s265
          %s267 = sand.u32 %s73, 1
          %s268 = smul.addr %s267, 8
          %s269 = scalar_lea.vmem [#allocation7], %s268
          %s271 = ssub.s32 128, 128
          %272 = vsyncadd %s266, %s271
          %s273 = smul.addr %s29, 2
          %s274 = smul.addr %s28, 2
          %s275 = sadd.s32 %s273, %s274
          %s276 = smul.addr %s275, 64
          %s277 = scalar_lea.hbm %s1, %s276
          %s279 = sshll.u32 %s269, 4
          %s280 = int_to_ptr.vmem [resolvable:$true] %s279
          %282 = dma.hbm_to_vmem [thread:$0]  %s277, 128, %s280, %s266
        $region36: #{tpu_custom_call.1} parent=27 // pred_fallthru
          _
      $region28: #{tpu_custom_call.1} parent=5 // pred_fallthru
        _
      %p283 = scmp.le.s32.totalorder 1, %s21
      %p284 = scmp.lt.s32.totalorder %s21, 3
      %p285 = pnand %p283, %p284
      %p286 = pneg %p285
      // Predicated region
      $region37: #{tpu_custom_call.1} parent=5 // pred_check
        _
      $region38: #{tpu_custom_call.1} parent=5 // pred_check_branch
        %288 = sbr.rel (%p285) target = $region40
      $region39: #{tpu_custom_call.1} parent=5 // pred_region
        %s289 = ssub.s32 %s21, 1
        %s290 = sand.u32 %s48, 1
        %s291 = scalar_lea.sflag [#allocation5], %s290
        %s292 = sand.u32 %s48, 1
        %s293 = smul.addr %s292, 8
        %s294 = scalar_lea.vmem [#allocation4], %s293
        // Predicated region
        $region41: #{tpu_custom_call.1} parent=39 // pred_check
          %p295 = pneg %p61
        $region42: #{tpu_custom_call.1} parent=39 // pred_check_branch
          %297 = sbr.rel (%p295) target = $region44
        $region43: #{tpu_custom_call.1} parent=39 // pred_region
          %298 = dma.done %s291, 128
        $region44: #{tpu_custom_call.1} parent=39 // pred_fallthru
          _
        %s299 = sand.u32 %s26, 1
        %s300 = scalar_lea.sflag [#allocation8], %s299
        %s301 = sand.u32 %s76, 1
        %s302 = smul.addr %s301, 8
        %s303 = scalar_lea.vmem [#allocation7], %s302
        // Predicated region
        $region45: #{tpu_custom_call.1} parent=39 // pred_check
          %p304 = pneg %p89
        $region46: #{tpu_custom_call.1} parent=39 // pred_check_branch
          %306 = sbr.rel (%p304) target = $region48
        $region47: #{tpu_custom_call.1} parent=39 // pred_region
          %307 = dma.done %s300, 128
        $region48: #{tpu_custom_call.1} parent=39 // pred_fallthru
          _
        // Predicated region
        $region49: #{tpu_custom_call.1} parent=39 // pred_check
          %p308 = pneg %p110
        $region50: #{tpu_custom_call.1} parent=39 // pred_check_branch
          %310 = sbr.rel (%p308) target = $region52
        $region51: #{tpu_custom_call.1} parent=39 // pred_region
          %311 = dma.done [#allocation8], 128
        $region52: #{tpu_custom_call.1} parent=39 // pred_fallthru
          _
        // Predicated region
        $region53: #{tpu_custom_call.1} parent=39 // pred_check
          %p312 = pneg %p131
        $region54: #{tpu_custom_call.1} parent=39 // pred_check_branch
          %314 = sbr.rel (%p312) target = $region56
        $region55: #{tpu_custom_call.1} parent=39 // pred_region
          %315 = dma.done [#allocation11], 128
        $region56: #{tpu_custom_call.1} parent=39 // pred_fallthru
          _
        // Predicated region
        $region57: #{tpu_custom_call.1} parent=39 // pred_check
          %p316 = pneg %p157
        $region58: #{tpu_custom_call.1} parent=39 // pred_check_branch
          %318 = sbr.rel (%p316) target = $region60
        $region59: #{tpu_custom_call.1} parent=39 // pred_region
          %319 = dma.done [#allocation11], 128
        $region60: #{tpu_custom_call.1} parent=39 // pred_fallthru
          _
        %s320 = sand.u32 %s48, 1
        %s321 = scalar_lea.sflag [#allocation5], %s320
        %s322 = sand.u32 %s48, 1
        %s323 = smul.addr %s322, 8
        %s324 = scalar_lea.vmem [#allocation4], %s323
        %p325 = pneg %p61
        %p326 = pneg %p58
        %s327 = sand.u32 %s26, 1
        %s328 = scalar_lea.sflag [#allocation8], %s327
        %s329 = sand.u32 %s76, 1
        %s330 = smul.addr %s329, 8
        %s331 = scalar_lea.vmem [#allocation7], %s330
        %p332 = pneg %p89
        %p333 = pneg %p86
        %p334 = pneg %p110
        %p335 = pneg %p107
        %p336 = pneg %p131
        %p337 = pneg %p128
        %p338 = pneg %p157
        %p339 = pneg %p154
        %p340 = pneg %p183
        %p341 = pneg %p180
        %s342 = sand.u32 %s170, 1
        %s343 = scalar_lea.sflag [#allocation6], %s342
        %s344 = sand.u32 %s170, 1
        %s345 = smul.addr %s344, 16
        %s346 = scalar_lea.vmem [#allocation13], %s345
        %v348 = vld [vmem:[#allocation9] sm:$0xf]
        %v349 = vld [vmem:[#allocation9 + $0x4] sm:$0xf]
        %v350 = vld [vmem:[%s294] sm:$0xff]
        %v353 = vunpack.c.l.b16 %v348
        %v354 = vunpack.c.l.b16 %v349
        %v355 = vpack.c.b16 %v354, %v353
        %v357 = vunpack.c.l.b16 %v350
        %v358 = vunpack.c.h.b16 %v350
        %v359 = vpack.c.b16 %v357, %v357
        %v360 = vpack.c.b16 %v358, %v358
        %vm361 = vcmask 64512
        %v363 = vsel %vm361, %v355, 0
        %vm365 = vcmask 1043456
        %v367 = vsel %vm365, %v359, 0
        %v370 = vsel %vm365, %v360, 0
        %372 = vmatprep.subr.bf16.mxu0 %v370
        %373 = vmatpush1.bf16.msra.mxu0 %v367
        %374 = vmatprep.subr.bf16.mxu0 0
        %375 = vmatpush1.bf16.msra.mxu0 0
        %376 = vmatprep.subr.bf16.mxu0 0
        %377 = vmatpush1.bf16.msra.mxu0 0
        %378 = vmatprep.subr.bf16.mxu0 0
        %379 = vmatpush1.bf16.msra.mxu0 0
        %380 = vmatprep.subr.bf16.mxu0 0
        %381 = vmatpush1.bf16.msra.mxu0 0
        %382 = vmatprep.subr.bf16.mxu0 0
        %383 = vmatpush1.bf16.msra.mxu0 0
        %384 = vmatprep.subr.bf16.mxu0 0
        %385 = vmatpush1.bf16.msra.mxu0 0
        %386 = vmatprep.subr.bf16.mxu0 0
        %387 = vmatpush1.bf16.msra.mxu0 0
        %388 = vmatprep.subr.bf16.mxu0 0
        %389 = vmatpush1.bf16.msra.mxu0 0
        %390 = vmatprep.subr.bf16.mxu0 0
        %391 = vmatpush1.bf16.msra.mxu0 0
        %392 = vmatprep.subr.bf16.mxu0 0
        %393 = vmatpush1.bf16.msra.mxu0 0
        %394 = vmatprep.subr.bf16.mxu0 0
        %395 = vmatpush1.bf16.msra.mxu0 0
        %396 = vmatprep.subr.bf16.mxu0 0
        %397 = vmatpush1.bf16.msra.mxu0 0
        %398 = vmatprep.subr.bf16.mxu0 0
        %399 = vmatpush1.bf16.msra.mxu0 0
        %400 = vmatprep.subr.bf16.mxu0 0
        %401 = vmatpush1.bf16.msra.mxu0 0
        %402 = vmatprep.subr.bf16.mxu0 0
        %403 = vmatpush1.bf16.msra.mxu0 0
        %404 = vmatprep.mubr.bf16.mxu0 0
        %405 = vmatmul.mubr.bf16.gmra.mrb[0].mxu0 %v363
        %v406 = vpop.f32.mrb[0].mxu0
        %v407 = vadd.f32 0.0, %v406
        %v408 = vpop.f32.mrb[0].mxu0
        %v409 = vadd.f32 0.0, %v408
        %v410 = vpop.f32.mrb[0].mxu0
        %v411 = vadd.f32 0.0, %v410
        %v412 = vpop.f32.mrb[0].mxu0
        %v413 = vadd.f32 0.0, %v412
        %414 = vdwg.mxu0
        %v415 = vpack.c.bf16 %v407, %v407
        %v416 = vpack.c.bf16 %v409, %v409
        %v419 = vunpack.c.l.b16 %v415
        %v420 = vunpack.c.l.b16 %v416
        %v421 = vpack.c.b16 %v420, %v419
        %423 = vst [vmem:[#allocation2] sm:$0xff] %v421
        %v424 = vpack.c.bf16 %v411, %v411
        %v425 = vpack.c.bf16 %v413, %v413
        %v428 = vunpack.c.l.b16 %v424
        %v429 = vunpack.c.l.b16 %v425
        %v430 = vpack.c.b16 %v429, %v428
        %s432 = scalar_lea.vmem [#allocation2], 8
        %433 = vst [vmem:[%s432] sm:$0xff] %v430
        %v434 = vld [vmem:[#allocation10] sm:$0xf]
        %v435 = vld [vmem:[#allocation10 + $0x4] sm:$0xf]
        %v436 = vld [vmem:[%s303] sm:$0xff]
        %v439 = vunpack.c.l.b16 %v434
        %v440 = vunpack.c.l.b16 %v435
        %v441 = vpack.c.b16 %v440, %v439
        %v443 = vunpack.c.l.b16 %v436
        %v444 = vunpack.c.h.b16 %v436
        %v445 = vpack.c.b16 %v443, %v443
        %v446 = vpack.c.b16 %v444, %v444
        %v448 = vsel %vm361, %v441, 0
        %v451 = vsel %vm365, %v445, 0
        %v454 = vsel %vm365, %v446, 0
        %456 = vmatprep.subr.bf16.mxu0 %v454
        %457 = vmatpush1.bf16.msra.mxu0 %v451
        %458 = vmatprep.subr.bf16.mxu0 0
        %459 = vmatpush1.bf16.msra.mxu0 0
        %460 = vmatprep.subr.bf16.mxu0 0
        %461 = vmatpush1.bf16.msra.mxu0 0
        %462 = vmatprep.subr.bf16.mxu0 0
        %463 = vmatpush1.bf16.msra.mxu0 0
        %464 = vmatprep.subr.bf16.mxu0 0
        %465 = vmatpush1.bf16.msra.mxu0 0
        %466 = vmatprep.subr.bf16.mxu0 0
        %467 = vmatpush1.bf16.msra.mxu0 0
        %468 = vmatprep.subr.bf16.mxu0 0
        %469 = vmatpush1.bf16.msra.mxu0 0
        %470 = vmatprep.subr.bf16.mxu0 0
        %471 = vmatpush1.bf16.msra.mxu0 0
        %472 = vmatprep.subr.bf16.mxu0 0
        %473 = vmatpush1.bf16.msra.mxu0 0
        %474 = vmatprep.subr.bf16.mxu0 0
        %475 = vmatpush1.bf16.msra.mxu0 0
        %476 = vmatprep.subr.bf16.mxu0 0
        %477 = vmatpush1.bf16.msra.mxu0 0
        %478 = vmatprep.subr.bf16.mxu0 0
        %479 = vmatpush1.bf16.msra.mxu0 0
        %480 = vmatprep.subr.bf16.mxu0 0
        %481 = vmatpush1.bf16.msra.mxu0 0
        %482 = vmatprep.subr.bf16.mxu0 0
        %483 = vmatpush1.bf16.msra.mxu0 0
        %484 = vmatprep.subr.bf16.mxu0 0
        %485 = vmatpush1.bf16.msra.mxu0 0
        %486 = vmatprep.subr.bf16.mxu0 0
        %487 = vmatpush1.bf16.msra.mxu0 0
        %488 = vmatprep.mubr.bf16.mxu0 0
        %489 = vmatmul.mubr.bf16.gmra.mrb[0].mxu0 %v448
        %v490 = vpop.f32.mrb[0].mxu0
        %v491 = vadd.f32 0.0, %v490
        %v492 = vpop.f32.mrb[0].mxu0
        %v493 = vadd.f32 0.0, %v492
        %v494 = vpop.f32.mrb[0].mxu0
        %v495 = vadd.f32 0.0, %v494
        %v496 = vpop.f32.mrb[0].mxu0
        %v497 = vadd.f32 0.0, %v496
        %498 = vdwg.mxu0
        %v499 = vpack.c.bf16 %v491, %v491
        %v500 = vpack.c.bf16 %v493, %v493
        %v503 = vunpack.c.l.b16 %v499
        %v504 = vunpack.c.l.b16 %v500
        %v505 = vpack.c.b16 %v504, %v503
        %507 = vst [vmem:[#allocation3] sm:$0xff] %v505
        %v508 = vpack.c.bf16 %v495, %v495
        %v509 = vpack.c.bf16 %v497, %v497
        %v512 = vunpack.c.l.b16 %v508
        %v513 = vunpack.c.l.b16 %v509
        %v514 = vpack.c.b16 %v513, %v512
        %s516 = scalar_lea.vmem [#allocation3], 8
        %517 = vst [vmem:[%s516] sm:$0xff] %v514
        %v518 = vld [vmem:[#allocation3] sm:$0xff]
        %s519 = sadd.s32 0, 2
        %s520 = smul.addr %s519, 4
        %s521 = scalar_lea.vmem [#allocation3], %s520
        %v522 = vld [vmem:[%s521] sm:$0xff]
        %v523 = vld [vmem:[#allocation2] sm:$0xff]
        %v524 = vld [vmem:[%s432] sm:$0xff]
        %v526 = vunpack.c.l.b16 %v518
        %v527 = vunpack.c.h.b16 %v518
        %v528 = vpack.c.b16 %v526, %v526
        %v529 = vpack.c.b16 %v527, %v527
        %532 = vxpose.xlu0.c.b16.start [1/8] %v528, 128
        %533 = vxpose.xlu0.c.b16.cont [2/8] 0, 128
        %534 = vxpose.xlu0.c.b16.cont [3/8] 0, 128
        %535 = vxpose.xlu0.c.b16.cont [4/8] 0, 128
        %536 = vxpose.xlu0.c.b16.cont [5/8] 0, 128
        %537 = vxpose.xlu0.c.b16.cont [6/8] 0, 128
        %538 = vxpose.xlu0.c.b16.cont [7/8] 0, 128
        %539 = vxpose.xlu0.c.b16.end [8/8] 0, 128
        %v540 = vpop.trf.xlu0
        %v541 = vpop.trf.xlu0
        %v542 = vpop.trf.xlu0
        %v543 = vpop.trf.xlu0
        %v544 = vpop.trf.xlu0
        %v545 = vpop.trf.xlu0
        %v546 = vpop.trf.xlu0
        %v547 = vpop.trf.xlu0
        %548 = vxpose.xlu0.c.b16.start [1/8] %v529, 128
        %549 = vxpose.xlu0.c.b16.cont [2/8] 0, 128
        %550 = vxpose.xlu0.c.b16.cont [3/8] 0, 128
        %551 = vxpose.xlu0.c.b16.cont [4/8] 0, 128
        %552 = vxpose.xlu0.c.b16.cont [5/8] 0, 128
        %553 = vxpose.xlu0.c.b16.cont [6/8] 0, 128
        %554 = vxpose.xlu0.c.b16.cont [7/8] 0, 128
        %555 = vxpose.xlu0.c.b16.end [8/8] 0, 128
        %v556 = vpop.trf.xlu0
        %v557 = vpop.trf.xlu0
        %v558 = vpop.trf.xlu0
        %v559 = vpop.trf.xlu0
        %v560 = vpop.trf.xlu0
        %v561 = vpop.trf.xlu0
        %v562 = vpop.trf.xlu0
        %v563 = vpop.trf.xlu0
        %v565 = vunpack.c.l.b16 %v523
        %v566 = vunpack.c.h.b16 %v523
        %v567 = vpack.c.b16 %v565, %v565
        %v568 = vpack.c.b16 %v566, %v566
        %v570 = vsel %vm361, %v540, 0
        %v573 = vsel %vm361, %v541, 0
        %v576 = vsel %vm361, %v542, 0
        %v579 = vsel %vm361, %v543, 0
        %v582 = vsel %vm361, %v544, 0
        %v585 = vsel %vm361, %v545, 0
        %v588 = vsel %vm361, %v546, 0
        %v591 = vsel %vm361, %v547, 0
        %v594 = vsel %vm361, %v556, 0
        %v597 = vsel %vm361, %v557, 0
        %v600 = vsel %vm361, %v558, 0
        %v603 = vsel %vm361, %v559, 0
        %v606 = vsel %vm361, %v560, 0
        %v609 = vsel %vm361, %v561, 0
        %v612 = vsel %vm361, %v562, 0
        %v615 = vsel %vm361, %v563, 0
        %v618 = vsel %vm365, %v567, 0
        %v621 = vsel %vm365, %v568, 0
        %623 = vmatprep.subr.bf16.mxu0 %v621
        %624 = vmatpush1.bf16.msra.mxu0 %v618
        %625 = vmatprep.subr.bf16.mxu0 0
        %626 = vmatpush1.bf16.msra.mxu0 0
        %627 = vmatprep.subr.bf16.mxu0 0
        %628 = vmatpush1.bf16.msra.mxu0 0
        %629 = vmatprep.subr.bf16.mxu0 0
        %630 = vmatpush1.bf16.msra.mxu0 0
        %631 = vmatprep.subr.bf16.mxu0 0
        %632 = vmatpush1.bf16.msra.mxu0 0
        %633 = vmatprep.subr.bf16.mxu0 0
        %634 = vmatpush1.bf16.msra.mxu0 0
        %635 = vmatprep.subr.bf16.mxu0 0
        %636 = vmatpush1.bf16.msra.mxu0 0
        %637 = vmatprep.subr.bf16.mxu0 0
        %638 = vmatpush1.bf16.msra.mxu0 0
        %639 = vmatprep.subr.bf16.mxu0 0
        %640 = vmatpush1.bf16.msra.mxu0 0
        %641 = vmatprep.subr.bf16.mxu0 0
        %642 = vmatpush1.bf16.msra.mxu0 0
        %643 = vmatprep.subr.bf16.mxu0 0
        %644 = vmatpush1.bf16.msra.mxu0 0
        %645 = vmatprep.subr.bf16.mxu0 0
        %646 = vmatpush1.bf16.msra.mxu0 0
        %647 = vmatprep.subr.bf16.mxu0 0
        %648 = vmatpush1.bf16.msra.mxu0 0
        %649 = vmatprep.subr.bf16.mxu0 0
        %650 = vmatpush1.bf16.msra.mxu0 0
        %651 = vmatprep.subr.bf16.mxu0 0
        %652 = vmatpush1.bf16.msra.mxu0 0
        %653 = vmatprep.subr.bf16.mxu0 0
        %654 = vmatpush1.bf16.msra.mxu0 0
        %655 = vmatprep.mubr.bf16.mxu0 0
        %656 = vmatmul.mubr.bf16.gmra.mrb[0].mxu0 %v570
        %v657 = vpop.f32.mrb[0].mxu0
        %v658 = vadd.f32 0.0, %v657
        %v659 = vpop.f32.mrb[0].mxu0
        %v660 = vadd.f32 0.0, %v659
        %v661 = vpop.f32.mrb[0].mxu0
        %v662 = vadd.f32 0.0, %v661
        %v663 = vpop.f32.mrb[0].mxu0
        %v664 = vadd.f32 0.0, %v663
        %665 = vmatprep.mubr.bf16.mxu0 0
        %666 = vmatmul.mubr.bf16.gmra.mrb[0].mxu0 %v573
        %v667 = vpop.f32.mrb[0].mxu0
        %v668 = vadd.f32 0.0, %v667
        %v669 = vpop.f32.mrb[0].mxu0
        %v670 = vadd.f32 0.0, %v669
        %v671 = vpop.f32.mrb[0].mxu0
        %v672 = vadd.f32 0.0, %v671
        %v673 = vpop.f32.mrb[0].mxu0
        %v674 = vadd.f32 0.0, %v673
        %675 = vmatprep.mubr.bf16.mxu0 0
        %676 = vmatmul.mubr.bf16.gmra.mrb[0].mxu0 %v576
        %v677 = vpop.f32.mrb[0].mxu0
        %v678 = vadd.f32 0.0, %v677
        %v679 = vpop.f32.mrb[0].mxu0
        %v680 = vadd.f32 0.0, %v679
        %v681 = vpop.f32.mrb[0].mxu0
        %v682 = vadd.f32 0.0, %v681
        %v683 = vpop.f32.mrb[0].mxu0
        %v684 = vadd.f32 0.0, %v683
        %685 = vmatprep.mubr.bf16.mxu0 0
        %686 = vmatmul.mubr.bf16.gmra.mrb[0].mxu0 %v579
        %v687 = vpop.f32.mrb[0].mxu0
        %v688 = vadd.f32 0.0, %v687
        %v689 = vpop.f32.mrb[0].mxu0
        %v690 = vadd.f32 0.0, %v689
        %v691 = vpop.f32.mrb[0].mxu0
        %v692 = vadd.f32 0.0, %v691
        %v693 = vpop.f32.mrb[0].mxu0
        %v694 = vadd.f32 0.0, %v693
        %695 = vmatprep.mubr.bf16.mxu0 0
        %696 = vmatmul.mubr.bf16.gmra.mrb[0].mxu0 %v582
        %v697 = vpop.f32.mrb[0].mxu0
        %v698 = vadd.f32 0.0, %v697
        %v699 = vpop.f32.mrb[0].mxu0
        %v700 = vadd.f32 0.0, %v699
        %v701 = vpop.f32.mrb[0].mxu0
        %v702 = vadd.f32 0.0, %v701
        %v703 = vpop.f32.mrb[0].mxu0
        %v704 = vadd.f32 0.0, %v703
        %705 = vmatprep.mubr.bf16.mxu0 0
        %706 = vmatmul.mubr.bf16.gmra.mrb[0].mxu0 %v585
        %v707 = vpop.f32.mrb[0].mxu0
        %v708 = vadd.f32 0.0, %v707
        %v709 = vpop.f32.mrb[0].mxu0
        %v710 = vadd.f32 0.0, %v709
        %v711 = vpop.f32.mrb[0].mxu0
        %v712 = vadd.f32 0.0, %v711
        %v713 = vpop.f32.mrb[0].mxu0
        %v714 = vadd.f32 0.0, %v713
        %715 = vmatprep.mubr.bf16.mxu0 0
        %716 = vmatmul.mubr.bf16.gmra.mrb[0].mxu0 %v588
        %v717 = vpop.f32.mrb[0].mxu0
        %v718 = vadd.f32 0.0, %v717
        %v719 = vpop.f32.mrb[0].mxu0
        %v720 = vadd.f32 0.0, %v719
        %v721 = vpop.f32.mrb[0].mxu0
        %v722 = vadd.f32 0.0, %v721
        %v723 = vpop.f32.mrb[0].mxu0
        %v724 = vadd.f32 0.0, %v723
        %725 = vmatprep.mubr.bf16.mxu0 0
        %726 = vmatmul.mubr.bf16.gmra.mrb[0].mxu0 %v591
        %v727 = vpop.f32.mrb[0].mxu0
        %v728 = vadd.f32 0.0, %v727
        %v729 = vpop.f32.mrb[0].mxu0
        %v730 = vadd.f32 0.0, %v729
        %v731 = vpop.f32.mrb[0].mxu0
        %v732 = vadd.f32 0.0, %v731
        %v733 = vpop.f32.mrb[0].mxu0
        %v734 = vadd.f32 0.0, %v733
        %735 = vmatprep.mubr.bf16.mxu0 0
        %736 = vmatmul.mubr.bf16.gmra.mrb[0].mxu0 %v594
        %v737 = vpop.f32.mrb[0].mxu0
        %v738 = vadd.f32 0.0, %v737
        %v739 = vpop.f32.mrb[0].mxu0
        %v740 = vadd.f32 0.0, %v739
        %v741 = vpop.f32.mrb[0].mxu0
        %v742 = vadd.f32 0.0, %v741
        %v743 = vpop.f32.mrb[0].mxu0
        %v744 = vadd.f32 0.0, %v743
        %745 = vmatprep.mubr.bf16.mxu0 0
        %746 = vmatmul.mubr.bf16.gmra.mrb[0].mxu0 %v597
        %v747 = vpop.f32.mrb[0].mxu0
        %v748 = vadd.f32 0.0, %v747
        %v749 = vpop.f32.mrb[0].mxu0
        %v750 = vadd.f32 0.0, %v749
        %v751 = vpop.f32.mrb[0].mxu0
        %v752 = vadd.f32 0.0, %v751
        %v753 = vpop.f32.mrb[0].mxu0
        %v754 = vadd.f32 0.0, %v753
        %755 = vmatprep.mubr.bf16.mxu0 0
        %756 = vmatmul.mubr.bf16.gmra.mrb[0].mxu0 %v600
        %v757 = vpop.f32.mrb[0].mxu0
        %v758 = vadd.f32 0.0, %v757
        %v759 = vpop.f32.mrb[0].mxu0
        %v760 = vadd.f32 0.0, %v759
        %v761 = vpop.f32.mrb[0].mxu0
        %v762 = vadd.f32 0.0, %v761
        %v763 = vpop.f32.mrb[0].mxu0
        %v764 = vadd.f32 0.0, %v763
        %765 = vmatprep.mubr.bf16.mxu0 0
        %766 = vmatmul.mubr.bf16.gmra.mrb[0].mxu0 %v603
        %v767 = vpop.f32.mrb[0].mxu0
        %v768 = vadd.f32 0.0, %v767
        %v769 = vpop.f32.mrb[0].mxu0
        %v770 = vadd.f32 0.0, %v769
        %v771 = vpop.f32.mrb[0].mxu0
        %v772 = vadd.f32 0.0, %v771
        %v773 = vpop.f32.mrb[0].mxu0
        %v774 = vadd.f32 0.0, %v773
        %775 = vmatprep.mubr.bf16.mxu0 0
        %776 = vmatmul.mubr.bf16.gmra.mrb[0].mxu0 %v606
        %v777 = vpop.f32.mrb[0].mxu0
        %v778 = vadd.f32 0.0, %v777
        %v779 = vpop.f32.mrb[0].mxu0
        %v780 = vadd.f32 0.0, %v779
        %v781 = vpop.f32.mrb[0].mxu0
        %v782 = vadd.f32 0.0, %v781
        %v783 = vpop.f32.mrb[0].mxu0
        %v784 = vadd.f32 0.0, %v783
        %785 = vmatprep.mubr.bf16.mxu0 0
        %786 = vmatmul.mubr.bf16.gmra.mrb[0].mxu0 %v609
        %v787 = vpop.f32.mrb[0].mxu0
        %v788 = vadd.f32 0.0, %v787
        %v789 = vpop.f32.mrb[0].mxu0
        %v790 = vadd.f32 0.0, %v789
        %v791 = vpop.f32.mrb[0].mxu0
        %v792 = vadd.f32 0.0, %v791
        %v793 = vpop.f32.mrb[0].mxu0
        %v794 = vadd.f32 0.0, %v793
        %795 = vmatprep.mubr.bf16.mxu0 0
        %796 = vmatmul.mubr.bf16.gmra.mrb[0].mxu0 %v612
        %v797 = vpop.f32.mrb[0].mxu0
        %v798 = vadd.f32 0.0, %v797
        %v799 = vpop.f32.mrb[0].mxu0
        %v800 = vadd.f32 0.0, %v799
        %v801 = vpop.f32.mrb[0].mxu0
        %v802 = vadd.f32 0.0, %v801
        %v803 = vpop.f32.mrb[0].mxu0
        %v804 = vadd.f32 0.0, %v803
        %805 = vmatprep.mubr.bf16.mxu0 0
        %806 = vmatmul.mubr.bf16.gmra.mrb[0].mxu0 %v615
        %v807 = vpop.f32.mrb[0].mxu0
        %v808 = vadd.f32 0.0, %v807
        %v809 = vpop.f32.mrb[0].mxu0
        %v810 = vadd.f32 0.0, %v809
        %v811 = vpop.f32.mrb[0].mxu0
        %v812 = vadd.f32 0.0, %v811
        %v813 = vpop.f32.mrb[0].mxu0
        %v814 = vadd.f32 0.0, %v813
        %815 = vdwg.mxu0
        %v817 = vunpack.c.l.b16 %v522
        %v818 = vunpack.c.h.b16 %v522
        %v819 = vpack.c.b16 %v817, %v817
        %v820 = vpack.c.b16 %v818, %v818
        %823 = vxpose.xlu0.c.b16.start [1/8] %v819, 128
        %824 = vxpose.xlu0.c.b16.cont [2/8] 0, 128
        %825 = vxpose.xlu0.c.b16.cont [3/8] 0, 128
        %826 = vxpose.xlu0.c.b16.cont [4/8] 0, 128
        %827 = vxpose.xlu0.c.b16.cont [5/8] 0, 128
        %828 = vxpose.xlu0.c.b16.cont [6/8] 0, 128
        %829 = vxpose.xlu0.c.b16.cont [7/8] 0, 128
        %830 = vxpose.xlu0.c.b16.end [8/8] 0, 128
        %v831 = vpop.trf.xlu0
        %v832 = vpop.trf.xlu0
        %v833 = vpop.trf.xlu0
        %v834 = vpop.trf.xlu0
        %v835 = vpop.trf.xlu0
        %v836 = vpop.trf.xlu0
        %v837 = vpop.trf.xlu0
        %v838 = vpop.trf.xlu0
        %839 = vxpose.xlu0.c.b16.start [1/8] %v820, 128
        %840 = vxpose.xlu0.c.b16.cont [2/8] 0, 128
        %841 = vxpose.xlu0.c.b16.cont [3/8] 0, 128
        %842 = vxpose.xlu0.c.b16.cont [4/8] 0, 128
        %843 = vxpose.xlu0.c.b16.cont [5/8] 0, 128
        %844 = vxpose.xlu0.c.b16.cont [6/8] 0, 128
        %845 = vxpose.xlu0.c.b16.cont [7/8] 0, 128
        %846 = vxpose.xlu0.c.b16.end [8/8] 0, 128
        %v847 = vpop.trf.xlu0
        %v848 = vpop.trf.xlu0
        %v849 = vpop.trf.xlu0
        %v850 = vpop.trf.xlu0
        %v851 = vpop.trf.xlu0
        %v852 = vpop.trf.xlu0
        %v853 = vpop.trf.xlu0
        %v854 = vpop.trf.xlu0
        %v856 = vunpack.c.l.b16 %v524
        %v857 = vunpack.c.h.b16 %v524
        %v858 = vpack.c.b16 %v856, %v856
        %v859 = vpack.c.b16 %v857, %v857
        %v861 = vsel %vm361, %v831, 0
        %v864 = vsel %vm361, %v832, 0
        %v867 = vsel %vm361, %v833, 0
        %v870 = vsel %vm361, %v834, 0
        %v873 = vsel %vm361, %v835, 0
        %v876 = vsel %vm361, %v836, 0
        %v879 = vsel %vm361, %v837, 0
        %v882 = vsel %vm361, %v838, 0
        %v885 = vsel %vm361, %v847, 0
        %v888 = vsel %vm361, %v848, 0
        %v891 = vsel %vm361, %v849, 0
        %v894 = vsel %vm361, %v850, 0
        %v897 = vsel %vm361, %v851, 0
        %v900 = vsel %vm361, %v852, 0
        %v903 = vsel %vm361, %v853, 0
        %v906 = vsel %vm361, %v854, 0
        %v909 = vsel %vm365, %v858, 0
        %v912 = vsel %vm365, %v859, 0
        %914 = vmatprep.subr.bf16.mxu0 %v912
        %915 = vmatpush1.bf16.msra.mxu0 %v909
        %916 = vmatprep.subr.bf16.mxu0 0
        %917 = vmatpush1.bf16.msra.mxu0 0
        %918 = vmatprep.subr.bf16.mxu0 0
        %919 = vmatpush1.bf16.msra.mxu0 0
        %920 = vmatprep.subr.bf16.mxu0 0
        %921 = vmatpush1.bf16.msra.mxu0 0
        %922 = vmatprep.subr.bf16.mxu0 0
        %923 = vmatpush1.bf16.msra.mxu0 0
        %924 = vmatprep.subr.bf16.mxu0 0
        %925 = vmatpush1.bf16.msra.mxu0 0
        %926 = vmatprep.subr.bf16.mxu0 0
        %927 = vmatpush1.bf16.msra.mxu0 0
        %928 = vmatprep.subr.bf16.mxu0 0
        %929 = vmatpush1.bf16.msra.mxu0 0
        %930 = vmatprep.subr.bf16.mxu0 0
        %931 = vmatpush1.bf16.msra.mxu0 0
        %932 = vmatprep.subr.bf16.mxu0 0
        %933 = vmatpush1.bf16.msra.mxu0 0
        %934 = vmatprep.subr.bf16.mxu0 0
        %935 = vmatpush1.bf16.msra.mxu0 0
        %936 = vmatprep.subr.bf16.mxu0 0
        %937 = vmatpush1.bf16.msra.mxu0 0
        %938 = vmatprep.subr.bf16.mxu0 0
        %939 = vmatpush1.bf16.msra.mxu0 0
        %940 = vmatprep.subr.bf16.mxu0 0
        %941 = vmatpush1.bf16.msra.mxu0 0
        %942 = vmatprep.subr.bf16.mxu0 0
        %943 = vmatpush1.bf16.msra.mxu0 0
        %944 = vmatprep.subr.bf16.mxu0 0
        %945 = vmatpush1.bf16.msra.mxu0 0
        %946 = vmatprep.mubr.bf16.mxu0 0
        %947 = vmatmul.mubr.bf16.gmra.mrb[0].mxu0 %v861
        %v948 = vpop.f32.mrb[0].mxu0
        %v949 = vadd.f32 0.0, %v948
        %v950 = vpop.f32.mrb[0].mxu0
        %v951 = vadd.f32 0.0, %v950
        %v952 = vpop.f32.mrb[0].mxu0
        %v953 = vadd.f32 0.0, %v952
        %v954 = vpop.f32.mrb[0].mxu0
        %v955 = vadd.f32 0.0, %v954
        %956 = vmatprep.mubr.bf16.mxu0 0
        %957 = vmatmul.mubr.bf16.gmra.mrb[0].mxu0 %v864
        %v958 = vpop.f32.mrb[0].mxu0
        %v959 = vadd.f32 0.0, %v958
        %v960 = vpop.f32.mrb[0].mxu0
        %v961 = vadd.f32 0.0, %v960
        %v962 = vpop.f32.mrb[0].mxu0
        %v963 = vadd.f32 0.0, %v962
        %v964 = vpop.f32.mrb[0].mxu0
        %v965 = vadd.f32 0.0, %v964
        %966 = vmatprep.mubr.bf16.mxu0 0
        %967 = vmatmul.mubr.bf16.gmra.mrb[0].mxu0 %v867
        %v968 = vpop.f32.mrb[0].mxu0
        %v969 = vadd.f32 0.0, %v968
        %v970 = vpop.f32.mrb[0].mxu0
        %v971 = vadd.f32 0.0, %v970
        %v972 = vpop.f32.mrb[0].mxu0
        %v973 = vadd.f32 0.0, %v972
        %v974 = vpop.f32.mrb[0].mxu0
        %v975 = vadd.f32 0.0, %v974
        %976 = vmatprep.mubr.bf16.mxu0 0
        %977 = vmatmul.mubr.bf16.gmra.mrb[0].mxu0 %v870
        %v978 = vpop.f32.mrb[0].mxu0
        %v979 = vadd.f32 0.0, %v978
        %v980 = vpop.f32.mrb[0].mxu0
        %v981 = vadd.f32 0.0, %v980
        %v982 = vpop.f32.mrb[0].mxu0
        %v983 = vadd.f32 0.0, %v982
        %v984 = vpop.f32.mrb[0].mxu0
        %v985 = vadd.f32 0.0, %v984
        %986 = vmatprep.mubr.bf16.mxu0 0
        %987 = vmatmul.mubr.bf16.gmra.mrb[0].mxu0 %v873
        %v988 = vpop.f32.mrb[0].mxu0
        %v989 = vadd.f32 0.0, %v988
        %v990 = vpop.f32.mrb[0].mxu0
        %v991 = vadd.f32 0.0, %v990
        %v992 = vpop.f32.mrb[0].mxu0
        %v993 = vadd.f32 0.0, %v992
        %v994 = vpop.f32.mrb[0].mxu0
        %v995 = vadd.f32 0.0, %v994
        %996 = vmatprep.mubr.bf16.mxu0 0
        %997 = vmatmul.mubr.bf16.gmra.mrb[0].mxu0 %v876
        %v998 = vpop.f32.mrb[0].mxu0
        %v999 = vadd.f32 0.0, %v998
        %v1000 = vpop.f32.mrb[0].mxu0
        %v1001 = vadd.f32 0.0, %v1000
        %v1002 = vpop.f32.mrb[0].mxu0
        %v1003 = vadd.f32 0.0, %v1002
        %v1004 = vpop.f32.mrb[0].mxu0
        %v1005 = vadd.f32 0.0, %v1004
        %1006 = vmatprep.mubr.bf16.mxu0 0
        %1007 = vmatmul.mubr.bf16.gmra.mrb[0].mxu0 %v879
        %v1008 = vpop.f32.mrb[0].mxu0
        %v1009 = vadd.f32 0.0, %v1008
        %v1010 = vpop.f32.mrb[0].mxu0
        %v1011 = vadd.f32 0.0, %v1010
        %v1012 = vpop.f32.mrb[0].mxu0
        %v1013 = vadd.f32 0.0, %v1012
        %v1014 = vpop.f32.mrb[0].mxu0
        %v1015 = vadd.f32 0.0, %v1014
        %1016 = vmatprep.mubr.bf16.mxu0 0
        %1017 = vmatmul.mubr.bf16.gmra.mrb[0].mxu0 %v882
        %v1018 = vpop.f32.mrb[0].mxu0
        %v1019 = vadd.f32 0.0, %v1018
        %v1020 = vpop.f32.mrb[0].mxu0
        %v1021 = vadd.f32 0.0, %v1020
        %v1022 = vpop.f32.mrb[0].mxu0
        %v1023 = vadd.f32 0.0, %v1022
        %v1024 = vpop.f32.mrb[0].mxu0
        %v1025 = vadd.f32 0.0, %v1024
        %1026 = vmatprep.mubr.bf16.mxu0 0
        %1027 = vmatmul.mubr.bf16.gmra.mrb[0].mxu0 %v885
        %v1028 = vpop.f32.mrb[0].mxu0
        %v1029 = vadd.f32 0.0, %v1028
        %v1030 = vpop.f32.mrb[0].mxu0
        %v1031 = vadd.f32 0.0, %v1030
        %v1032 = vpop.f32.mrb[0].mxu0
        %v1033 = vadd.f32 0.0, %v1032
        %v1034 = vpop.f32.mrb[0].mxu0
        %v1035 = vadd.f32 0.0, %v1034
        %1036 = vmatprep.mubr.bf16.mxu0 0
        %1037 = vmatmul.mubr.bf16.gmra.mrb[0].mxu0 %v888
        %v1038 = vpop.f32.mrb[0].mxu0
        %v1039 = vadd.f32 0.0, %v1038
        %v1040 = vpop.f32.mrb[0].mxu0
        %v1041 = vadd.f32 0.0, %v1040
        %v1042 = vpop.f32.mrb[0].mxu0
        %v1043 = vadd.f32 0.0, %v1042
        %v1044 = vpop.f32.mrb[0].mxu0
        %v1045 = vadd.f32 0.0, %v1044
        %1046 = vmatprep.mubr.bf16.mxu0 0
        %1047 = vmatmul.mubr.bf16.gmra.mrb[0].mxu0 %v891
        %v1048 = vpop.f32.mrb[0].mxu0
        %v1049 = vadd.f32 0.0, %v1048
        %v1050 = vpop.f32.mrb[0].mxu0
        %v1051 = vadd.f32 0.0, %v1050
        %v1052 = vpop.f32.mrb[0].mxu0
        %v1053 = vadd.f32 0.0, %v1052
        %v1054 = vpop.f32.mrb[0].mxu0
        %v1055 = vadd.f32 0.0, %v1054
        %1056 = vmatprep.mubr.bf16.mxu0 0
        %1057 = vmatmul.mubr.bf16.gmra.mrb[0].mxu0 %v894
        %v1058 = vpop.f32.mrb[0].mxu0
        %v1059 = vadd.f32 0.0, %v1058
        %v1060 = vpop.f32.mrb[0].mxu0
        %v1061 = vadd.f32 0.0, %v1060
        %v1062 = vpop.f32.mrb[0].mxu0
        %v1063 = vadd.f32 0.0, %v1062
        %v1064 = vpop.f32.mrb[0].mxu0
        %v1065 = vadd.f32 0.0, %v1064
        %1066 = vmatprep.mubr.bf16.mxu0 0
        %1067 = vmatmul.mubr.bf16.gmra.mrb[0].mxu0 %v897
        %v1068 = vpop.f32.mrb[0].mxu0
        %v1069 = vadd.f32 0.0, %v1068
        %v1070 = vpop.f32.mrb[0].mxu0
        %v1071 = vadd.f32 0.0, %v1070
        %v1072 = vpop.f32.mrb[0].mxu0
        %v1073 = vadd.f32 0.0, %v1072
        %v1074 = vpop.f32.mrb[0].mxu0
        %v1075 = vadd.f32 0.0, %v1074
        %1076 = vmatprep.mubr.bf16.mxu0 0
        %1077 = vmatmul.mubr.bf16.gmra.mrb[0].mxu0 %v900
        %v1078 = vpop.f32.mrb[0].mxu0
        %v1079 = vadd.f32 0.0, %v1078
        %v1080 = vpop.f32.mrb[0].mxu0
        %v1081 = vadd.f32 0.0, %v1080
        %v1082 = vpop.f32.mrb[0].mxu0
        %v1083 = vadd.f32 0.0, %v1082
        %v1084 = vpop.f32.mrb[0].mxu0
        %v1085 = vadd.f32 0.0, %v1084
        %1086 = vmatprep.mubr.bf16.mxu0 0
        %1087 = vmatmul.mubr.bf16.gmra.mrb[0].mxu0 %v903
        %v1088 = vpop.f32.mrb[0].mxu0
        %v1089 = vadd.f32 0.0, %v1088
        %v1090 = vpop.f32.mrb[0].mxu0
        %v1091 = vadd.f32 0.0, %v1090
        %v1092 = vpop.f32.mrb[0].mxu0
        %v1093 = vadd.f32 0.0, %v1092
        %v1094 = vpop.f32.mrb[0].mxu0
        %v1095 = vadd.f32 0.0, %v1094
        %1096 = vmatprep.mubr.bf16.mxu0 0
        %1097 = vmatmul.mubr.bf16.gmra.mrb[0].mxu0 %v906
        %v1098 = vpop.f32.mrb[0].mxu0
        %v1099 = vadd.f32 0.0, %v1098
        %v1100 = vpop.f32.mrb[0].mxu0
        %v1101 = vadd.f32 0.0, %v1100
        %v1102 = vpop.f32.mrb[0].mxu0
        %v1103 = vadd.f32 0.0, %v1102
        %v1104 = vpop.f32.mrb[0].mxu0
        %v1105 = vadd.f32 0.0, %v1104
        %1106 = vdwg.mxu0
        %v1107 = vmax.f32 %v658, %v668
        %v1108 = vmax.f32 %v662, %v672
        %v1109 = vmax.f32 %v1107, %v678
        %v1110 = vmax.f32 %v1108, %v682
        %v1111 = vmax.f32 %v1109, %v688
        %v1112 = vmax.f32 %v1110, %v692
        %v1113 = vmax.f32 %v1111, %v698
        %v1114 = vmax.f32 %v1112, %v702
        %v1115 = vmax.f32 %v1113, %v708
        %v1116 = vmax.f32 %v1114, %v712
        %v1117 = vmax.f32 %v1115, %v718
        %v1118 = vmax.f32 %v1116, %v722
        %v1119 = vmax.f32 %v1117, %v728
        %v1120 = vmax.f32 %v1118, %v732
        %v1121 = vmax.f32 %v1119, %v738
        %v1122 = vmax.f32 %v1120, %v742
        %v1123 = vmax.f32 %v1121, %v748
        %v1124 = vmax.f32 %v1122, %v752
        %v1125 = vmax.f32 %v1123, %v758
        %v1126 = vmax.f32 %v1124, %v762
        %v1127 = vmax.f32 %v1125, %v768
        %v1128 = vmax.f32 %v1126, %v772
        %v1129 = vmax.f32 %v1127, %v778
        %v1130 = vmax.f32 %v1128, %v782
        %v1131 = vmax.f32 %v1129, %v788
        %v1132 = vmax.f32 %v1130, %v792
        %v1133 = vmax.f32 %v1131, %v798
        %v1134 = vmax.f32 %v1132, %v802
        %v1135 = vmax.f32 %v1133, %v808
        %v1136 = vmax.f32 %v1134, %v812
        %v1137 = vmax.f32 %v1135, %v1136
        %v1138 = vrot.slane %v1137, 4
        %v1139 = vmax.f32 %v1137, %v1138
        %v1140 = vrot.slane %v1139, 2
        %v1141 = vmax.f32 %v1139, %v1140
        %v1142 = vrot.slane %v1141, 1
        %v1143 = vmax.f32 %v1141, %v1142
        %v1144 = vmax.f32 %v660, %v670
        %v1145 = vmax.f32 %v664, %v674
        %v1146 = vmax.f32 %v1144, %v680
        %v1147 = vmax.f32 %v1145, %v684
        %v1148 = vmax.f32 %v1146, %v690
        %v1149 = vmax.f32 %v1147, %v694
        %v1150 = vmax.f32 %v1148, %v700
        %v1151 = vmax.f32 %v1149, %v704
        %v1152 = vmax.f32 %v1150, %v710
        %v1153 = vmax.f32 %v1151, %v714
        %v1154 = vmax.f32 %v1152, %v720
        %v1155 = vmax.f32 %v1153, %v724
        %v1156 = vmax.f32 %v1154, %v730
        %v1157 = vmax.f32 %v1155, %v734
        %v1158 = vmax.f32 %v1156, %v740
        %v1159 = vmax.f32 %v1157, %v744
        %v1160 = vmax.f32 %v1158, %v750
        %v1161 = vmax.f32 %v1159, %v754
        %v1162 = vmax.f32 %v1160, %v760
        %v1163 = vmax.f32 %v1161, %v764
        %v1164 = vmax.f32 %v1162, %v770
        %v1165 = vmax.f32 %v1163, %v774
        %v1166 = vmax.f32 %v1164, %v780
        %v1167 = vmax.f32 %v1165, %v784
        %v1168 = vmax.f32 %v1166, %v790
        %v1169 = vmax.f32 %v1167, %v794
        %v1170 = vmax.f32 %v1168, %v800
        %v1171 = vmax.f32 %v1169, %v804
        %v1172 = vmax.f32 %v1170, %v810
        %v1173 = vmax.f32 %v1171, %v814
        %v1174 = vmax.f32 %v1172, %v1173
        %v1175 = vrot.slane %v1174, 4
        %v1176 = vmax.f32 %v1174, %v1175
        %v1177 = vrot.slane %v1176, 2
        %v1178 = vmax.f32 %v1176, %v1177
        %v1179 = vrot.slane %v1178, 1
        %v1180 = vmax.f32 %v1178, %v1179
        %v1181 = vmax.f32 %v1143, -1e+30
        %v1182 = vmax.f32 %v1180, -1e+30
        %v1183 = vsub.f32 %v658, %v1181
        %v1184 = vsub.f32 %v660, %v1182
        %v1185 = vsub.f32 %v662, %v1181
        %v1186 = vsub.f32 %v664, %v1182
        %v1187 = vsub.f32 %v668, %v1181
        %v1188 = vsub.f32 %v670, %v1182
        %v1189 = vsub.f32 %v672, %v1181
        %v1190 = vsub.f32 %v674, %v1182
        %v1191 = vsub.f32 %v678, %v1181
        %v1192 = vsub.f32 %v680, %v1182
        %v1193 = vsub.f32 %v682, %v1181
        %v1194 = vsub.f32 %v684, %v1182
        %v1195 = vsub.f32 %v688, %v1181
        %v1196 = vsub.f32 %v690, %v1182
        %v1197 = vsub.f32 %v692, %v1181
        %v1198 = vsub.f32 %v694, %v1182
        %v1199 = vsub.f32 %v698, %v1181
        %v1200 = vsub.f32 %v700, %v1182
        %v1201 = vsub.f32 %v702, %v1181
        %v1202 = vsub.f32 %v704, %v1182
        %v1203 = vsub.f32 %v708, %v1181
        %v1204 = vsub.f32 %v710, %v1182
        %v1205 = vsub.f32 %v712, %v1181
        %v1206 = vsub.f32 %v714, %v1182
        %v1207 = vsub.f32 %v718, %v1181
        %v1208 = vsub.f32 %v720, %v1182
        %v1209 = vsub.f32 %v722, %v1181
        %v1210 = vsub.f32 %v724, %v1182
        %v1211 = vsub.f32 %v728, %v1181
        %v1212 = vsub.f32 %v730, %v1182
        %v1213 = vsub.f32 %v732, %v1181
        %v1214 = vsub.f32 %v734, %v1182
        %v1215 = vsub.f32 %v738, %v1181
        %v1216 = vsub.f32 %v740, %v1182
        %v1217 = vsub.f32 %v742, %v1181
        %v1218 = vsub.f32 %v744, %v1182
        %v1219 = vsub.f32 %v748, %v1181
        %v1220 = vsub.f32 %v750, %v1182
        %v1221 = vsub.f32 %v752, %v1181
        %v1222 = vsub.f32 %v754, %v1182
        %v1223 = vsub.f32 %v758, %v1181
        %v1224 = vsub.f32 %v760, %v1182
        %v1225 = vsub.f32 %v762, %v1181
        %v1226 = vsub.f32 %v764, %v1182
        %v1227 = vsub.f32 %v768, %v1181
        %v1228 = vsub.f32 %v770, %v1182
        %v1229 = vsub.f32 %v772, %v1181
        %v1230 = vsub.f32 %v774, %v1182
        %v1231 = vsub.f32 %v778, %v1181
        %v1232 = vsub.f32 %v780, %v1182
        %v1233 = vsub.f32 %v782, %v1181
        %v1234 = vsub.f32 %v784, %v1182
        %v1235 = vsub.f32 %v788, %v1181
        %v1236 = vsub.f32 %v790, %v1182
        %v1237 = vsub.f32 %v792, %v1181
        %v1238 = vsub.f32 %v794, %v1182
        %v1239 = vsub.f32 %v798, %v1181
        %v1240 = vsub.f32 %v800, %v1182
        %v1241 = vsub.f32 %v802, %v1181
        %v1242 = vsub.f32 %v804, %v1182
        %v1243 = vsub.f32 %v808, %v1181
        %v1244 = vsub.f32 %v810, %v1182
        %v1245 = vsub.f32 %v812, %v1181
        %v1246 = vsub.f32 %v814, %v1182
        %v1247 = vmul.f32 %v1183, 1.442695
        %v1248 = vpow.pop %v1247
        %v1249 = vmul.f32 %v1184, 1.442695
        %v1250 = vpow.pop %v1249
        %v1251 = vmul.f32 %v1185, 1.442695
        %v1252 = vpow.pop %v1251
        %v1253 = vmul.f32 %v1186, 1.442695
        %v1254 = vpow.pop %v1253
        %v1255 = vmul.f32 %v1187, 1.442695
        %v1256 = vpow.pop %v1255
        %v1257 = vmul.f32 %v1188, 1.442695
        %v1258 = vpow.pop %v1257
        %v1259 = vmul.f32 %v1189, 1.442695
        %v1260 = vpow.pop %v1259
        %v1261 = vmul.f32 %v1190, 1.442695
        %v1262 = vpow.pop %v1261
        %v1263 = vmul.f32 %v1191, 1.442695
        %v1264 = vpow.pop %v1263
        %v1265 = vmul.f32 %v1192, 1.442695
        %v1266 = vpow.pop %v1265
        %v1267 = vmul.f32 %v1193, 1.442695
        %v1268 = vpow.pop %v1267
        %v1269 = vmul.f32 %v1194, 1.442695
        %v1270 = vpow.pop %v1269
        %v1271 = vmul.f32 %v1195, 1.442695
        %v1272 = vpow.pop %v1271
        %v1273 = vmul.f32 %v1196, 1.442695
        %v1274 = vpow.pop %v1273
        %v1275 = vmul.f32 %v1197, 1.442695
        %v1276 = vpow.pop %v1275
        %v1277 = vmul.f32 %v1198, 1.442695
        %v1278 = vpow.pop %v1277
        %v1279 = vmul.f32 %v1199, 1.442695
        %v1280 = vpow.pop %v1279
        %v1281 = vmul.f32 %v1200, 1.442695
        %v1282 = vpow.pop %v1281
        %v1283 = vmul.f32 %v1201, 1.442695
        %v1284 = vpow.pop %v1283
        %v1285 = vmul.f32 %v1202, 1.442695
        %v1286 = vpow.pop %v1285
        %v1287 = vmul.f32 %v1203, 1.442695
        %v1288 = vpow.pop %v1287
        %v1289 = vmul.f32 %v1204, 1.442695
        %v1290 = vpow.pop %v1289
        %v1291 = vmul.f32 %v1205, 1.442695
        %v1292 = vpow.pop %v1291
        %v1293 = vmul.f32 %v1206, 1.442695
        %v1294 = vpow.pop %v1293
        %v1295 = vmul.f32 %v1207, 1.442695
        %v1296 = vpow.pop %v1295
        %v1297 = vmul.f32 %v1208, 1.442695
        %v1298 = vpow.pop %v1297
        %v1299 = vmul.f32 %v1209, 1.442695
        %v1300 = vpow.pop %v1299
        %v1301 = vmul.f32 %v1210, 1.442695
        %v1302 = vpow.pop %v1301
        %v1303 = vmul.f32 %v1211, 1.442695
        %v1304 = vpow.pop %v1303
        %v1305 = vmul.f32 %v1212, 1.442695
        %v1306 = vpow.pop %v1305
        %v1307 = vmul.f32 %v1213, 1.442695
        %v1308 = vpow.pop %v1307
        %v1309 = vmul.f32 %v1214, 1.442695
        %v1310 = vpow.pop %v1309
        %v1311 = vmul.f32 %v1215, 1.442695
        %v1312 = vpow.pop %v1311
        %v1313 = vmul.f32 %v1216, 1.442695
        %v1314 = vpow.pop %v1313
        %v1315 = vmul.f32 %v1217, 1.442695
        %v1316 = vpow.pop %v1315
        %v1317 = vmul.f32 %v1218, 1.442695
        %v1318 = vpow.pop %v1317
        %v1319 = vmul.f32 %v1219, 1.442695
        %v1320 = vpow.pop %v1319
        %v1321 = vmul.f32 %v1220, 1.442695
        %v1322 = vpow.pop %v1321
        %v1323 = vmul.f32 %v1221, 1.442695
        %v1324 = vpow.pop %v1323
        %v1325 = vmul.f32 %v1222, 1.442695
        %v1326 = vpow.pop %v1325
        %v1327 = vmul.f32 %v1223, 1.442695
        %v1328 = vpow.pop %v1327
        %v1329 = vmul.f32 %v1224, 1.442695
        %v1330 = vpow.pop %v1329
        %v1331 = vmul.f32 %v1225, 1.442695
        %v1332 = vpow.pop %v1331
        %v1333 = vmul.f32 %v1226, 1.442695
        %v1334 = vpow.pop %v1333
        %v1335 = vmul.f32 %v1227, 1.442695
        %v1336 = vpow.pop %v1335
        %v1337 = vmul.f32 %v1228, 1.442695
        %v1338 = vpow.pop %v1337
        %v1339 = vmul.f32 %v1229, 1.442695
        %v1340 = vpow.pop %v1339
        %v1341 = vmul.f32 %v1230, 1.442695
        %v1342 = vpow.pop %v1341
        %v1343 = vmul.f32 %v1231, 1.442695
        %v1344 = vpow.pop %v1343
        %v1345 = vmul.f32 %v1232, 1.442695
        %v1346 = vpow.pop %v1345
        %v1347 = vmul.f32 %v1233, 1.442695
        %v1348 = vpow.pop %v1347
        %v1349 = vmul.f32 %v1234, 1.442695
        %v1350 = vpow.pop %v1349
        %v1351 = vmul.f32 %v1235, 1.442695
        %v1352 = vpow.pop %v1351
        %v1353 = vmul.f32 %v1236, 1.442695
        %v1354 = vpow.pop %v1353
        %v1355 = vmul.f32 %v1237, 1.442695
        %v1356 = vpow.pop %v1355
        %v1357 = vmul.f32 %v1238, 1.442695
        %v1358 = vpow.pop %v1357
        %v1359 = vmul.f32 %v1239, 1.442695
        %v1360 = vpow.pop %v1359
        %v1361 = vmul.f32 %v1240, 1.442695
        %v1362 = vpow.pop %v1361
        %v1363 = vmul.f32 %v1241, 1.442695
        %v1364 = vpow.pop %v1363
        %v1365 = vmul.f32 %v1242, 1.442695
        %v1366 = vpow.pop %v1365
        %v1367 = vmul.f32 %v1243, 1.442695
        %v1368 = vpow.pop %v1367
        %v1369 = vmul.f32 %v1244, 1.442695
        %v1370 = vpow.pop %v1369
        %v1371 = vmul.f32 %v1245, 1.442695
        %v1372 = vpow.pop %v1371
        %v1373 = vmul.f32 %v1246, 1.442695
        %v1374 = vpow.pop %v1373
        %v1375 = vsub.f32 -1e+30, %v1181
        %v1376 = vsub.f32 -1e+30, %v1182
        %v1377 = vmul.f32 %v1375, 1.442695
        %v1378 = vpow.pop %v1377
        %v1379 = vmul.f32 %v1376, 1.442695
        %v1380 = vpow.pop %v1379
        %v1381 = vmul.f32 %v1378, 0.0
        %v1382 = vmul.f32 %v1380, 0.0
        %v1383 = vadd.f32 %v1248, %v1252
        %v1384 = vadd.f32 %v1383, %v1256
        %v1385 = vadd.f32 %v1384, %v1260
        %v1386 = vadd.f32 %v1385, %v1264
        %v1387 = vadd.f32 %v1386, %v1268
        %v1388 = vadd.f32 %v1387, %v1272
        %v1389 = vadd.f32 %v1388, %v1276
        %v1390 = vadd.f32 %v1389, %v1280
        %v1391 = vadd.f32 %v1390, %v1284
        %v1392 = vadd.f32 %v1391, %v1288
        %v1393 = vadd.f32 %v1392, %v1292
        %v1394 = vadd.f32 %v1393, %v1296
        %v1395 = vadd.f32 %v1394, %v1300
        %v1396 = vadd.f32 %v1395, %v1304
        %v1397 = vadd.f32 %v1396, %v1308
        %v1398 = vadd.f32 %v1397, %v1312
        %v1399 = vadd.f32 %v1398, %v1316
        %v1400 = vadd.f32 %v1399, %v1320
        %v1401 = vadd.f32 %v1400, %v1324
        %v1402 = vadd.f32 %v1401, %v1328
        %v1403 = vadd.f32 %v1402, %v1332
        %v1404 = vadd.f32 %v1403, %v1336
        %v1405 = vadd.f32 %v1404, %v1340
        %v1406 = vadd.f32 %v1405, %v1344
        %v1407 = vadd.f32 %v1406, %v1348
        %v1408 = vadd.f32 %v1407, %v1352
        %v1409 = vadd.f32 %v1408, %v1356
        %v1410 = vadd.f32 %v1409, %v1360
        %v1411 = vadd.f32 %v1410, %v1364
        %v1412 = vadd.f32 %v1411, %v1368
        %v1413 = vadd.f32 %v1412, %v1372
        %v1414 = vrot.slane %v1413, 4
        %v1415 = vadd.f32 %v1413, %v1414
        %v1416 = vrot.slane %v1415, 2
        %v1417 = vadd.f32 %v1415, %v1416
        %v1418 = vrot.slane %v1417, 1
        %v1419 = vadd.f32 %v1417, %v1418
        %v1420 = vadd.f32 %v1250, %v1254
        %v1421 = vadd.f32 %v1420, %v1258
        %v1422 = vadd.f32 %v1421, %v1262
        %v1423 = vadd.f32 %v1422, %v1266
        %v1424 = vadd.f32 %v1423, %v1270
        %v1425 = vadd.f32 %v1424, %v1274
        %v1426 = vadd.f32 %v1425, %v1278
        %v1427 = vadd.f32 %v1426, %v1282
        %v1428 = vadd.f32 %v1427, %v1286
        %v1429 = vadd.f32 %v1428, %v1290
        %v1430 = vadd.f32 %v1429, %v1294
        %v1431 = vadd.f32 %v1430, %v1298
        %v1432 = vadd.f32 %v1431, %v1302
        %v1433 = vadd.f32 %v1432, %v1306
        %v1434 = vadd.f32 %v1433, %v1310
        %v1435 = vadd.f32 %v1434, %v1314
        %v1436 = vadd.f32 %v1435, %v1318
        %v1437 = vadd.f32 %v1436, %v1322
        %v1438 = vadd.f32 %v1437, %v1326
        %v1439 = vadd.f32 %v1438, %v1330
        %v1440 = vadd.f32 %v1439, %v1334
        %v1441 = vadd.f32 %v1440, %v1338
        %v1442 = vadd.f32 %v1441, %v1342
        %v1443 = vadd.f32 %v1442, %v1346
        %v1444 = vadd.f32 %v1443, %v1350
        %v1445 = vadd.f32 %v1444, %v1354
        %v1446 = vadd.f32 %v1445, %v1358
        %v1447 = vadd.f32 %v1446, %v1362
        %v1448 = vadd.f32 %v1447, %v1366
        %v1449 = vadd.f32 %v1448, %v1370
        %v1450 = vadd.f32 %v1449, %v1374
        %v1451 = vrot.slane %v1450, 4
        %v1452 = vadd.f32 %v1450, %v1451
        %v1453 = vrot.slane %v1452, 2
        %v1454 = vadd.f32 %v1452, %v1453
        %v1455 = vrot.slane %v1454, 1
        %v1456 = vadd.f32 %v1454, %v1455
        %v1457 = vadd.f32 %v1381, %v1419
        %v1458 = vadd.f32 %v1382, %v1456
        %v1459 = vmul.f32 %v1248, %v949
        %v1460 = vmul.f32 %v1250, %v951
        %v1461 = vmul.f32 %v1252, %v953
        %v1462 = vmul.f32 %v1254, %v955
        %v1463 = vmul.f32 %v1256, %v959
        %v1464 = vmul.f32 %v1258, %v961
        %v1465 = vmul.f32 %v1260, %v963
        %v1466 = vmul.f32 %v1262, %v965
        %v1467 = vmul.f32 %v1264, %v969
        %v1468 = vmul.f32 %v1266, %v971
        %v1469 = vmul.f32 %v1268, %v973
        %v1470 = vmul.f32 %v1270, %v975
        %v1471 = vmul.f32 %v1272, %v979
        %v1472 = vmul.f32 %v1274, %v981
        %v1473 = vmul.f32 %v1276, %v983
        %v1474 = vmul.f32 %v1278, %v985
        %v1475 = vmul.f32 %v1280, %v989
        %v1476 = vmul.f32 %v1282, %v991
        %v1477 = vmul.f32 %v1284, %v993
        %v1478 = vmul.f32 %v1286, %v995
        %v1479 = vmul.f32 %v1288, %v999
        %v1480 = vmul.f32 %v1290, %v1001
        %v1481 = vmul.f32 %v1292, %v1003
        %v1482 = vmul.f32 %v1294, %v1005
        %v1483 = vmul.f32 %v1296, %v1009
        %v1484 = vmul.f32 %v1298, %v1011
        %v1485 = vmul.f32 %v1300, %v1013
        %v1486 = vmul.f32 %v1302, %v1015
        %v1487 = vmul.f32 %v1304, %v1019
        %v1488 = vmul.f32 %v1306, %v1021
        %v1489 = vmul.f32 %v1308, %v1023
        %v1490 = vmul.f32 %v1310, %v1025
        %v1491 = vmul.f32 %v1312, %v1029
        %v1492 = vmul.f32 %v1314, %v1031
        %v1493 = vmul.f32 %v1316, %v1033
        %v1494 = vmul.f32 %v1318, %v1035
        %v1495 = vmul.f32 %v1320, %v1039
        %v1496 = vmul.f32 %v1322, %v1041
        %v1497 = vmul.f32 %v1324, %v1043
        %v1498 = vmul.f32 %v1326, %v1045
        %v1499 = vmul.f32 %v1328, %v1049
        %v1500 = vmul.f32 %v1330, %v1051
        %v1501 = vmul.f32 %v1332, %v1053
        %v1502 = vmul.f32 %v1334, %v1055
        %v1503 = vmul.f32 %v1336, %v1059
        %v1504 = vmul.f32 %v1338, %v1061
        %v1505 = vmul.f32 %v1340, %v1063
        %v1506 = vmul.f32 %v1342, %v1065
        %v1507 = vmul.f32 %v1344, %v1069
        %v1508 = vmul.f32 %v1346, %v1071
        %v1509 = vmul.f32 %v1348, %v1073
        %v1510 = vmul.f32 %v1350, %v1075
        %v1511 = vmul.f32 %v1352, %v1079
        %v1512 = vmul.f32 %v1354, %v1081
        %v1513 = vmul.f32 %v1356, %v1083
        %v1514 = vmul.f32 %v1358, %v1085
        %v1515 = vmul.f32 %v1360, %v1089
        %v1516 = vmul.f32 %v1362, %v1091
        %v1517 = vmul.f32 %v1364, %v1093
        %v1518 = vmul.f32 %v1366, %v1095
        %v1519 = vmul.f32 %v1368, %v1099
        %v1520 = vmul.f32 %v1370, %v1101
        %v1521 = vmul.f32 %v1372, %v1103
        %v1522 = vmul.f32 %v1374, %v1105
        %v1523 = vadd.f32 %v1459, %v1461
        %v1524 = vadd.f32 %v1523, %v1463
        %v1525 = vadd.f32 %v1524, %v1465
        %v1526 = vadd.f32 %v1525, %v1467
        %v1527 = vadd.f32 %v1526, %v1469
        %v1528 = vadd.f32 %v1527, %v1471
        %v1529 = vadd.f32 %v1528, %v1473
        %v1530 = vadd.f32 %v1529, %v1475
        %v1531 = vadd.f32 %v1530, %v1477
        %v1532 = vadd.f32 %v1531, %v1479
        %v1533 = vadd.f32 %v1532, %v1481
        %v1534 = vadd.f32 %v1533, %v1483
        %v1535 = vadd.f32 %v1534, %v1485
        %v1536 = vadd.f32 %v1535, %v1487
        %v1537 = vadd.f32 %v1536, %v1489
        %v1538 = vadd.f32 %v1537, %v1491
        %v1539 = vadd.f32 %v1538, %v1493
        %v1540 = vadd.f32 %v1539, %v1495
        %v1541 = vadd.f32 %v1540, %v1497
        %v1542 = vadd.f32 %v1541, %v1499
        %v1543 = vadd.f32 %v1542, %v1501
        %v1544 = vadd.f32 %v1543, %v1503
        %v1545 = vadd.f32 %v1544, %v1505
        %v1546 = vadd.f32 %v1545, %v1507
        %v1547 = vadd.f32 %v1546, %v1509
        %v1548 = vadd.f32 %v1547, %v1511
        %v1549 = vadd.f32 %v1548, %v1513
        %v1550 = vadd.f32 %v1549, %v1515
        %v1551 = vadd.f32 %v1550, %v1517
        %v1552 = vadd.f32 %v1551, %v1519
        %v1553 = vadd.f32 %v1552, %v1521
        %v1554 = vrot.slane %v1553, 4
        %v1555 = vadd.f32 %v1553, %v1554
        %v1556 = vrot.slane %v1555, 2
        %v1557 = vadd.f32 %v1555, %v1556
        %v1558 = vrot.slane %v1557, 1
        %v1559 = vadd.f32 %v1557, %v1558
        %v1560 = vadd.f32 %v1460, %v1462
        %v1561 = vadd.f32 %v1560, %v1464
        %v1562 = vadd.f32 %v1561, %v1466
        %v1563 = vadd.f32 %v1562, %v1468
        %v1564 = vadd.f32 %v1563, %v1470
        %v1565 = vadd.f32 %v1564, %v1472
        %v1566 = vadd.f32 %v1565, %v1474
        %v1567 = vadd.f32 %v1566, %v1476
        %v1568 = vadd.f32 %v1567, %v1478
        %v1569 = vadd.f32 %v1568, %v1480
        %v1570 = vadd.f32 %v1569, %v1482
        %v1571 = vadd.f32 %v1570, %v1484
        %v1572 = vadd.f32 %v1571, %v1486
        %v1573 = vadd.f32 %v1572, %v1488
        %v1574 = vadd.f32 %v1573, %v1490
        %v1575 = vadd.f32 %v1574, %v1492
        %v1576 = vadd.f32 %v1575, %v1494
        %v1577 = vadd.f32 %v1576, %v1496
        %v1578 = vadd.f32 %v1577, %v1498
        %v1579 = vadd.f32 %v1578, %v1500
        %v1580 = vadd.f32 %v1579, %v1502
        %v1581 = vadd.f32 %v1580, %v1504
        %v1582 = vadd.f32 %v1581, %v1506
        %v1583 = vadd.f32 %v1582, %v1508
        %v1584 = vadd.f32 %v1583, %v1510
        %v1585 = vadd.f32 %v1584, %v1512
        %v1586 = vadd.f32 %v1585, %v1514
        %v1587 = vadd.f32 %v1586, %v1516
        %v1588 = vadd.f32 %v1587, %v1518
        %v1589 = vadd.f32 %v1588, %v1520
        %v1590 = vadd.f32 %v1589, %v1522
        %v1591 = vrot.slane %v1590, 4
        %v1592 = vadd.f32 %v1590, %v1591
        %v1593 = vrot.slane %v1592, 2
        %v1594 = vadd.f32 %v1592, %v1593
        %v1595 = vrot.slane %v1594, 1
        %v1596 = vadd.f32 %v1594, %v1595
        %v1597 = vadd.f32 %v1381, %v1559
        %v1598 = vadd.f32 %v1382, %v1596
        %v1599 = vrcp.pop %v1457
        %v1600 = vrcp.pop %v1458
        %v1601 = vmul.f32 %v1597, %v1599
        %v1602 = vmul.f32 %v1598, %v1600
        %v1603 = vld [vmem:[#allocation12] sm:$0xff]
        %1605 = vset.pattern.permute.xlu0 0
        %1606 = vperm.xlu0 %1605, %v1603
        %v1607 = vpop.permute.xlu0 %1606
        %v1609 = vmul.f32 %v1607, %v1601
        %v1610 = vmul.f32 %v1607, %v1602
        %p1611 = scmp.eq.s32.totalorder %s31, 0
        // Predicated region
        $region61: #{tpu_custom_call.1} parent=39 // pred_check
          %p1612 = pneg %p1611
        $region62: #{tpu_custom_call.1} parent=39 // pred_check_branch
          %1614 = sbr.rel (%p1612) target = $region64
        $region63: #{tpu_custom_call.1} parent=39 // pred_region
          %1615 = vst [vmem:[%s346] sm:$0xff] %v1609
          %1616 = vst [vmem:[%s346 + $0x8] sm:$0xff] %v1610
        $region64: #{tpu_custom_call.1} parent=39 // pred_fallthru
          _
        %p1617 = scmp.gt.s32.totalorder %s31, 0
        // Predicated region
        $region65: #{tpu_custom_call.1} parent=39 // pred_check
          %p1618 = pneg %p1617
        $region66: #{tpu_custom_call.1} parent=39 // pred_check_branch
          %1620 = sbr.rel (%p1618) target = $region68
        $region67: #{tpu_custom_call.1} parent=39 // pred_region
          %v1621 = vld [vmem:[%s346] sm:$0xff]
          %v1622 = vld [vmem:[%s346 + $0x8] sm:$0xff]
          %v1623 = vadd.f32 %v1621, %v1609
          %v1624 = vadd.f32 %v1622, %v1610
          %1625 = vst [vmem:[%s346] sm:$0xff] %v1623
          %1626 = vst [vmem:[%s346 + $0x8] sm:$0xff] %v1624
        $region68: #{tpu_custom_call.1} parent=39 // pred_fallthru
          _
        // Predicated region
        $region69: #{tpu_custom_call.1} parent=39 // pred_check
          %p1627 = pneg %p1611
        $region70: #{tpu_custom_call.1} parent=39 // pred_check_branch
          %1629 = sbr.rel (%p1627) target = $region72
        $region71: #{tpu_custom_call.1} parent=39 // pred_region
          %v1630 = vld [vmem:[%s346] sm:$0xff]
          %v1631 = vld [vmem:[%s346 + $0x8] sm:$0xff]
          %v1632 = vmax.f32 %v1630, 0.0
          %v1633 = vmax.f32 %v1631, 0.0
          %1634 = vst [vmem:[%s346] sm:$0xff] %v1632
          %1635 = vst [vmem:[%s346 + $0x8] sm:$0xff] %v1633
        $region72: #{tpu_custom_call.1} parent=39 // pred_fallthru
          _
        %s1636 = sand.u32 %s170, 1
        %s1637 = scalar_lea.sflag [#allocation6], %s1636
        %s1638 = sand.u32 %s170, 1
        %s1639 = smul.addr %s1638, 16
        %s1640 = scalar_lea.vmem [#allocation13], %s1639
        // Predicated region
        $region73: #{tpu_custom_call.1} parent=39 // pred_check
          %p1641 = pneg %p180
        $region74: #{tpu_custom_call.1} parent=39 // pred_check_branch
          %1643 = sbr.rel (%p1641) target = $region76
        $region75: #{tpu_custom_call.1} parent=39 // pred_region
          %s1645 = ssub.s32 256, 256
          %1646 = vsyncadd %s1637, %s1645
          %s1647 = smul.addr %s30, 2
          %s1648 = smul.addr %s1647, 128
          %s1649 = scalar_lea.hbm %s5, %s1648
          %s1651 = sshll.u32 %s1640, 4
          %s1652 = int_to_ptr.vmem [resolvable:$true] %s1651
          %1654 = dma.vmem_to_hbm [thread:$0]  %s1652, 256, %s1649, %s1637
        $region76: #{tpu_custom_call.1} parent=39 // pred_fallthru
          _
      $region40: #{tpu_custom_call.1} parent=5 // pred_fallthru
        _
      %p1655 = scmp.le.s32.totalorder 2, %s21
      // Predicated region
      $region77: #{tpu_custom_call.1} parent=5 // pred_check
        %p1656 = pneg %p1655
      $region78: #{tpu_custom_call.1} parent=5 // pred_check_branch
        %1658 = sbr.rel (%p1656) target = $region80
      $region79: #{tpu_custom_call.1} parent=5 // pred_region
        %s1659 = ssub.s32 %s21, 2
        // Predicated region
        $region81: #{tpu_custom_call.1} parent=79 // pred_check
          %p1660 = pneg %p186
        $region82: #{tpu_custom_call.1} parent=79 // pred_check_branch
          %1662 = sbr.rel (%p1660) target = $region84
        $region83: #{tpu_custom_call.1} parent=79 // pred_region
          %s1663 = sand.u32 %s171, 1
          %s1664 = scalar_lea.sflag [#allocation6], %s1663
          %s1665 = sand.u32 %s171, 1
          %s1666 = smul.addr %s1665, 16
          %s1667 = scalar_lea.vmem [#allocation13], %s1666
          %1668 = dma.done %s1664, 256
        $region84: #{tpu_custom_call.1} parent=79 // pred_fallthru
          _
      $region80: #{tpu_custom_call.1} parent=5 // pred_fallthru
        _
    $region6: #{tpu_custom_call.1} parent=1 // loop_footer
      %s25 = sadd.s32 1, %s21
    $region7: #{tpu_custom_call.1} parent=1 // loop_footer_branch
      %20 = sbr.rel target = $region3
    $region8: #{tpu_custom_call.1} parent=1 // loop_exit
      _
    %1669 = vsyncpa [#allocation5], 1
    %s1670 = scalar_lea.sflag [#allocation5], 1
    %1671 = vsyncpa %s1670, 1
    %1672 = vsyncpa [#allocation8], 1
    %s1673 = scalar_lea.sflag [#allocation8], 1
    %1674 = vsyncpa %s1673, 1
    %1675 = vsyncpa [#allocation11], 1
    %1676 = vsyncpa [#allocation6], 1
    %s1677 = scalar_lea.sflag [#allocation6], 1
    %1678 = vsyncpa %s1677, 1

</llo_original>
